<compile_context>
chip_gen: v7x
topology: tpu7x:2x2x1
jax: 0.10.0
libtpu: 0.0.40
codegen_flags: <defaults>
</compile_context>

<pallas_src>
import jax
import jax.numpy as jnp
from jax.experimental import pallas as pl
from jax.experimental.pallas import tpu as pltpu

OUT_DIM = 7            # age buckets (module's self.out_dim)
OUT_PAD = 128          # lane-dense padded logit width (padded once at init)
NEG_SLOPE = 0.2        # nn.LeakyReLU(0.2)
DEFAULT_TILE_B = 1024  # big tiles: kernel is overhead/HBM-bound, not MXU-bound
SINGLE_TILE_MAX_B = 4096  # no-grid fast path when the whole batch fits one tile


def _round_up(x, m):
    return ((x + m - 1) // m) * m


def _choose_tiling(B, tile_b):
    b8 = _round_up(B, 8)
    if tile_b is None:
        tile_b = b8 if b8 <= SINGLE_TILE_MAX_B else DEFAULT_TILE_B
    tile_b = max(8, _round_up(int(tile_b), 8))
    tile_b = min(tile_b, b8)
    b_pad = _round_up(B, tile_b)
    return tile_b, b_pad


def _weight_list(params):
    return (params["w1"], params["b1"], params["w2"], params["b2"],
            params["w3"], params["b3"], params["w4"], params["b4"],
            params["w5"], params["b5"])      # w5/b5 already padded to OUT_PAD


def _weight_bytes(weights):
    return sum(int(w.size) * w.dtype.itemsize for w in weights)


def _vmem_limit(in_tile_bytes, out_tile_bytes, extra_tile_bytes, weight_bytes):
    # double-buffered streamed tiles + resident weights + small headroom,
    # capped at 48 MiB (safe under v7x's 64 MiB per-core VMEM).
    need = 2 * (in_tile_bytes + out_tile_bytes + extra_tile_bytes) + weight_bytes + (2 << 20)
    return int(min(max(need, 8 << 20), 48 << 20))


def _real_layer_dims(params):
    # un-padded layer shapes for honest cost accounting (layer 5 uses OUT_DIM).
    return [tuple(params["w1"].shape), tuple(params["w2"].shape),
            tuple(params["w3"].shape), tuple(params["w4"].shape),
            (int(params["w5"].shape[0]), OUT_DIM)]


# ---------------------------------------------------------------------------
# Kernels
# ---------------------------------------------------------------------------

def _mlp_logits_f32(x, w1, b1, w2, b2, w3, b3, w4, b4, w5, b5):
    """Fused 5-layer MLP; returns f32 logits [tile_b, OUT_PAD] (padded cols == 0)."""
    def dense_leaky(h, w_ref, b_ref):
        z = jnp.dot(h, w_ref[...], preferred_element_type=jnp.float32)   # MXU, f32 acc
        z = z + b_ref[...].astype(jnp.float32)
        z = jnp.where(z > 0, z, NEG_SLOPE * z)                           # f32 VPU (v5e-safe)
        return z.astype(w_ref.dtype)                                     # bf16 feed for next MXU

    h = dense_leaky(x, w1, b1)
    h = dense_leaky(h, w2, b2)
    h = dense_leaky(h, w3, b3)
    h = dense_leaky(h, w4, b4)
    logits = jnp.dot(h, w5[...], preferred_element_type=jnp.float32)
    return logits + b5[...].astype(jnp.float32)


def _logits_kernel(x_ref, w1, b1, w2, b2, w3, b3, w4, b4, w5, b5, out_ref):
    logits = _mlp_logits_f32(x_ref[...], w1, b1, w2, b2, w3, b3, w4, b4, w5, b5)
    out_ref[...] = logits.astype(out_ref.dtype)   # bf16 lane-dense [tile_b, 128] store


def _loss_kernel(lab_ref, x_ref, w1, b1, w2, b2, w3, b3, w4, b4, w5, b5, nll_ref):
    """Fused MLP + masked log-softmax + per-row NLL (output is [tile_b, 1] f32)."""
    logits = _mlp_logits_f32(x_ref[...], w1, b1, w2, b2, w3, b3, w4, b4, w5, b5)
    col = jax.lax.broadcasted_iota(jnp.int32, logits.shape, 1)
    # mask the 121 zero-padded logit columns out of the softmax
    masked = jnp.where(col < OUT_DIM, logits, jnp.float32(-1e30))
    m = jnp.max(masked, axis=-1, keepdims=True)
    z = jnp.exp(masked - m)
    lse = m + jnp.log(jnp.sum(z, axis=-1, keepdims=True))
    # one-hot gather of the label logit (labels are in [0, OUT_DIM))
    picked = jnp.sum(jnp.where(col == lab_ref[...], logits, 0.0), axis=-1, keepdims=True)
    nll_ref[...] = (lse - picked).astype(nll_ref.dtype)


# ---------------------------------------------------------------------------
# Wrappers
# ---------------------------------------------------------------------------

def age_discriminator_net(params, ents_emb, *, tile_b=None, interpret=False):
    """Run the AgeDiscriminator `net` MLP; returns f32 logits [B, OUT_DIM]."""
    B, D = ents_emb.shape
    cdt = params["w1"].dtype
    tile_b, b_pad = _choose_tiling(B, tile_b)

    x = ents_emb.astype(cdt)
    if b_pad != B:
        x = jnp.pad(x, ((0, b_pad - B), (0, 0)))

    weights = _weight_list(params)
    wbytes = _weight_bytes(weights)

    grid = (b_pad // tile_b,)
    in_specs = [pl.BlockSpec((tile_b, D), lambda i: (i, 0))]                # streamed per tile
    in_specs += [pl.BlockSpec(w.shape, lambda i: (0, 0)) for w in weights]  # VMEM-resident
    out_specs = pl.BlockSpec((tile_b, OUT_PAD), lambda i: (i, 0))

    flops = 2 * b_pad * sum(m * n for m, n in _real_layer_dims(params))
    out_bytes = b_pad * OUT_PAD * jnp.dtype(cdt).itemsize
    cost = pl.CostEstimate(flops=int(flops), transcendentals=0,
                           bytes_accessed=int(x.size) * x.dtype.itemsize + wbytes + out_bytes)

    in_tile = tile_b * D * jnp.dtype(cdt).itemsize
    out_tile = tile_b * OUT_PAD * jnp.dtype(cdt).itemsize
    vmem_limit = _vmem_limit(in_tile, out_tile, 0, wbytes)

    out = pl.pallas_call(
        _logits_kernel,
        out_shape=jax.ShapeDtypeStruct((b_pad, OUT_PAD), cdt),   # bf16 store, cast outside
        grid=grid,
        in_specs=in_specs,
        out_specs=out_specs,
        compiler_params=pltpu.CompilerParams(
            dimension_semantics=("parallel",),   # independent batch tiles (megacore-friendly)
            vmem_limit_bytes=vmem_limit),
        cost_estimate=cost,
        interpret=interpret,
    )(x, *weights)

    return out[:B, :OUT_DIM].astype(jnp.float32)


def age_discriminator_loss(params, ents_emb, labels, *, tile_b=None, interpret=False):
    """Fused MLP + CrossEntropyLoss(mean); labels are int [B] in [0, OUT_DIM)."""
    B, D = ents_emb.shape
    cdt = params["w1"].dtype
    tile_b, b_pad = _choose_tiling(B, tile_b)

    x = ents_emb.astype(cdt)
    lab = labels.astype(jnp.int32).reshape(B, 1)
    if b_pad != B:
        x = jnp.pad(x, ((0, b_pad - B), (0, 0)))
        lab = jnp.pad(lab, ((0, b_pad - B), (0, 0)))   # padded rows dropped before the mean

    weights = _weight_list(params)
    wbytes = _weight_bytes(weights)

    grid = (b_pad // tile_b,)
    in_specs = [pl.BlockSpec((tile_b, 1), lambda i: (i, 0)),    # labels, streamed
                pl.BlockSpec((tile_b, D), lambda i: (i, 0))]    # activations, streamed
    in_specs += [pl.BlockSpec(w.shape, lambda i: (0, 0)) for w in weights]  # VMEM-resident
    out_specs = pl.BlockSpec((tile_b, 1), lambda i: (i, 0))

    flops = 2 * b_pad * sum(m * n for m, n in _real_layer_dims(params))
    cost = pl.CostEstimate(
        flops=int(flops),
        transcendentals=int(b_pad * (OUT_DIM + 1)),     # exp per real column + log per row
        bytes_accessed=int(x.size) * x.dtype.itemsize + wbytes + b_pad * (4 + 4))

    in_tile = tile_b * D * jnp.dtype(cdt).itemsize
    vmem_limit = _vmem_limit(in_tile, tile_b * 4, tile_b * 4, wbytes)

    nll = pl.pallas_call(
        _loss_kernel,
        out_shape=jax.ShapeDtypeStruct((b_pad, 1), jnp.float32),   # 4 B/row output
        grid=grid,
        in_specs=in_specs,
        out_specs=out_specs,
        compiler_params=pltpu.CompilerParams(
            dimension_semantics=("parallel",),
            vmem_limit_bytes=vmem_limit),
        cost_estimate=cost,
        interpret=interpret,
    )(lab, x, *weights)

    return jnp.mean(nll[:B, 0])


def age_discriminator_forward(params, ents_emb, ents, users_sensitive,
                              return_loss=False, tile_b=None):
    """Matches AgeDiscriminator.forward(ents_emb, ents, return_loss)."""
    labels = users_sensitive[ents]                                  # tiny int gather = glue
    if return_loss:
        return age_discriminator_loss(params, ents_emb, labels, tile_b=tile_b)
    logits = age_discriminator_net(params, ents_emb, tile_b=tile_b)  # [B, 7] f32
    if logits.shape[0] == 1:
        logits = logits[0]           # mimic torch .squeeze() for B == 1 -> shape (7,)
    return logits, labels


# ---------------------------------------------------------------------------
# Params + pure-JAX reference (for correctness checking)
# ---------------------------------------------------------------------------

def init_params(key, embed_dim, compute_dtype=jnp.bfloat16):
    """torch nn.Linear default init: U(-1/sqrt(fan_in), 1/sqrt(fan_in)) for W and b.
    Weights stored transposed (in, out) for x @ W, bf16 (MXU feed); biases f32.
    The final layer is zero-padded 7 -> OUT_PAD columns ONCE here (lane-dense store)."""
    d = int(embed_dim)
    h2, h4 = d // 2, d // 4
    dims = [(d, h2), (h2, h2), (h2, h4), (h4, h4), (h4, OUT_DIM)]
    keys = jax.random.split(key, 2 * len(dims))
    params = {}
    for li, (fan_in, fan_out) in enumerate(dims):
        lim = 1.0 / (fan_in ** 0.5)
        w = jax.random.uniform(keys[2 * li], (fan_in, fan_out), jnp.float32, -lim, lim)
        b = jax.random.uniform(keys[2 * li + 1], (1, fan_out), jnp.float32, -lim, lim)
        if li == len(dims) - 1:                     # pre-pad final layer once
            w = jnp.pad(w, ((0, 0), (0, OUT_PAD - OUT_DIM)))
            b = jnp.pad(b, ((0, 0), (0, OUT_PAD - OUT_DIM)))
        params[f"w{li + 1}"] = w.astype(compute_dtype)
        params[f"b{li + 1}"] = b                    # f32 biases
    return params


def _reference_logits(params, ents_emb):
    h = ents_emb.astype(params["w1"].dtype)
    for li in range(1, 5):
        w, b = params[f"w{li}"], params[f"b{li}"]
        z = jnp.dot(h, w, preferred_element_type=jnp.float32) + b
        z = jnp.where(z > 0, z, NEG_SLOPE * z)
        h = z.astype(w.dtype)
    logits = jnp.dot(h, params["w5"], preferred_element_type=jnp.float32) + params["b5"]
    return logits[:, :OUT_DIM]


def _reference_loss(params, ents_emb, labels):
    logits = _reference_logits(params, ents_emb)
    logp = jax.nn.log_softmax(logits, axis=-1)
    return -jnp.mean(jnp.take_along_axis(logp, labels[:, None], axis=-1)[:, 0])


# ---------------------------------------------------------------------------
# Demo / self-test
# ---------------------------------------------------------------------------

if __name__ == "__main__":
    key = jax.random.PRNGKey(0)
    embed_dim = 32        # -> hidden sizes 16, 16, 8, 8, out 7
    batch = 256           # single-tile fast path (grid=(1,))
    num_users = 64

    kp, ke, ki, ks, ke2, ki2 = jax.random.split(key, 6)
    params = init_params(kp, embed_dim)
    ents_emb = jax.random.normal(ke, (batch, embed_dim), jnp.float32)
    ents = jax.random.randint(ki, (batch,), 0, num_users)
    users_sensitive = jax.random.randint(ks, (num_users,), 0, OUT_DIM)

    # --- single-tile fast path ---------------------------------------------
    logits, labels = age_discriminator_forward(params, ents_emb, ents, users_sensitive)
    loss = age_discriminator_forward(params, ents_emb, ents, users_sensitive, return_loss=True)
    jax.block_until_ready((logits, labels, loss))

    assert logits.shape == (batch, OUT_DIM)
    assert labels.shape == (batch,)
    assert loss.shape == ()

    ref_logits = _reference_logits(params, ents_emb)
    ref_loss = _reference_loss(params, ents_emb, labels)
    assert float(jnp.max(jnp.abs(logits - ref_logits))) < 2e-2, "logits mismatch vs reference"
    assert abs(float(loss) - float(ref_loss)) < 5e-3, "fused CE loss mismatch vs reference"

    # --- multi-tile grid path (padded batch rows + batch pipelining) --------
    batch2 = 1280                        # tile_b=512 -> b_pad=1536, grid=(3,)
    ents_emb2 = jax.random.normal(ke2, (batch2, embed_dim), jnp.float32)
    ents2 = jax.random.randint(ki2, (batch2,), 0, num_users)
    labels2 = users_sensitive[ents2]

    logits2 = age_discriminator_net(params, ents_emb2, tile_b=512)
    loss2 = age_discriminator_loss(params, ents_emb2, labels2, tile_b=512)
    jax.block_until_ready((logits2, loss2))

    assert logits2.shape == (batch2, OUT_DIM)
    ref_logits2 = _reference_logits(params, ents_emb2)
    ref_loss2 = _reference_loss(params, ents_emb2, labels2)
    assert float(jnp.max(jnp.abs(logits2 - ref_logits2))) < 2e-2, "grid-path logits mismatch"
    assert abs(float(loss2) - float(ref_loss2)) < 5e-3, "grid-path fused loss mismatch"

    print("KERNEL_OK")
</pallas_src>

<mosaic_0001>
module attributes {stable_mosaic.version = 11 : i64} {
  func.func @_logits_kernel(%arg0: i32, %arg1: memref<256x32xbf16, #tpu.memory_space<vmem>>, %arg2: memref<32x16xbf16, #tpu.memory_space<vmem>>, %arg3: memref<1x16xf32, #tpu.memory_space<vmem>>, %arg4: memref<16x16xbf16, #tpu.memory_space<vmem>>, %arg5: memref<1x16xf32, #tpu.memory_space<vmem>>, %arg6: memref<16x8xbf16, #tpu.memory_space<vmem>>, %arg7: memref<1x8xf32, #tpu.memory_space<vmem>>, %arg8: memref<8x8xbf16, #tpu.memory_space<vmem>>, %arg9: memref<1x8xf32, #tpu.memory_space<vmem>>, %arg10: memref<8x128xbf16, #tpu.memory_space<vmem>>, %arg11: memref<1x128xf32, #tpu.memory_space<vmem>>, %arg12: memref<256x128xbf16, #tpu.memory_space<vmem>>) attributes {dimension_semantics = [#tpu.dimension_semantics<parallel>], iteration_bounds = array<i64: 1>, scalar_prefetch = 0 : i64, scratch_operands = 0 : i64, tpu.core_type = #tpu.core_type<tc>, window_params = [{transform_indices = @transform_0, window_bounds = array<i64: 256, 32>}, {pipeline_mode = #tpu.pipeline_mode<synchronous>, transform_indices = @transform_1, window_bounds = array<i64: 32, 16>}, {pipeline_mode = #tpu.pipeline_mode<synchronous>, transform_indices = @transform_2, window_bounds = array<i64: 1, 16>}, {pipeline_mode = #tpu.pipeline_mode<synchronous>, transform_indices = @transform_3, window_bounds = array<i64: 16, 16>}, {pipeline_mode = #tpu.pipeline_mode<synchronous>, transform_indices = @transform_4, window_bounds = array<i64: 1, 16>}, {pipeline_mode = #tpu.pipeline_mode<synchronous>, transform_indices = @transform_5, window_bounds = array<i64: 16, 8>}, {pipeline_mode = #tpu.pipeline_mode<synchronous>, transform_indices = @transform_6, window_bounds = array<i64: 1, 8>}, {pipeline_mode = #tpu.pipeline_mode<synchronous>, transform_indices = @transform_7, window_bounds = array<i64: 8, 8>}, {pipeline_mode = #tpu.pipeline_mode<synchronous>, transform_indices = @transform_8, window_bounds = array<i64: 1, 8>}, {pipeline_mode = #tpu.pipeline_mode<synchronous>, transform_indices = @transform_9, window_bounds = array<i64: 8, 128>}, {pipeline_mode = #tpu.pipeline_mode<synchronous>, transform_indices = @transform_10, window_bounds = array<i64: 1, 128>}, {transform_indices = @transform_11, window_bounds = array<i64: 256, 128>}]} {
    %c0 = arith.constant 0 : index
    %c0_0 = arith.constant 0 : index
    %0 = vector.load %arg1[%c0, %c0_0] : memref<256x32xbf16, #tpu.memory_space<vmem>>, vector<256x32xbf16>
    %c0_1 = arith.constant 0 : index
    %c0_2 = arith.constant 0 : index
    %1 = vector.load %arg2[%c0_1, %c0_2] : memref<32x16xbf16, #tpu.memory_space<vmem>>, vector<32x16xbf16>
    %cst = arith.constant dense<0.000000e+00> : vector<256x16xf32>
    %2 = tpu.matmul %0, %1, %cst {dimension_numbers = #tpu.dot_dimension_numbers<[1], [0], [0], [1], [0, 0, 1, 1], [], []>} : vector<256x32xbf16>, vector<32x16xbf16>, vector<256x16xf32> -> vector<256x16xf32>
    %c0_3 = arith.constant 0 : index
    %c0_4 = arith.constant 0 : index
    %3 = vector.load %arg3[%c0_3, %c0_4] : memref<1x16xf32, #tpu.memory_space<vmem>>, vector<1x16xf32>
    %4 = vector.broadcast %3 : vector<1x16xf32> to vector<256x16xf32>
    %5 = arith.addf %2, %4 : vector<256x16xf32>
    %cst_5 = arith.constant 0.000000e+00 : f32
    %6 = vector.broadcast %cst_5 : f32 to vector<256x16xf32>
    %7 = arith.cmpf ogt, %5, %6 : vector<256x16xf32>
    %cst_6 = arith.constant 2.000000e-01 : f32
    %8 = vector.broadcast %cst_6 : f32 to vector<256x16xf32>
    %9 = arith.mulf %8, %5 : vector<256x16xf32>
    %10 = arith.select %7, %5, %9 : vector<256x16xi1>, vector<256x16xf32>
    %11 = arith.truncf %10 : vector<256x16xf32> to vector<256x16xbf16>
    %c0_7 = arith.constant 0 : index
    %c0_8 = arith.constant 0 : index
    %12 = vector.load %arg4[%c0_7, %c0_8] : memref<16x16xbf16, #tpu.memory_space<vmem>>, vector<16x16xbf16>
    %cst_9 = arith.constant dense<0.000000e+00> : vector<256x16xf32>
    %13 = tpu.matmul %11, %12, %cst_9 {dimension_numbers = #tpu.dot_dimension_numbers<[1], [0], [0], [1], [0, 0, 1, 1], [], []>} : vector<256x16xbf16>, vector<16x16xbf16>, vector<256x16xf32> -> vector<256x16xf32>
    %c0_10 = arith.constant 0 : index
    %c0_11 = arith.constant 0 : index
    %14 = vector.load %arg5[%c0_10, %c0_11] : memref<1x16xf32, #tpu.memory_space<vmem>>, vector<1x16xf32>
    %15 = vector.broadcast %14 : vector<1x16xf32> to vector<256x16xf32>
    %16 = arith.addf %13, %15 : vector<256x16xf32>
    %cst_12 = arith.constant 0.000000e+00 : f32
    %17 = vector.broadcast %cst_12 : f32 to vector<256x16xf32>
    %18 = arith.cmpf ogt, %16, %17 : vector<256x16xf32>
    %cst_13 = arith.constant 2.000000e-01 : f32
    %19 = vector.broadcast %cst_13 : f32 to vector<256x16xf32>
    %20 = arith.mulf %19, %16 : vector<256x16xf32>
    %21 = arith.select %18, %16, %20 : vector<256x16xi1>, vector<256x16xf32>
    %22 = arith.truncf %21 : vector<256x16xf32> to vector<256x16xbf16>
    %c0_14 = arith.constant 0 : index
    %c0_15 = arith.constant 0 : index
    %23 = vector.load %arg6[%c0_14, %c0_15] : memref<16x8xbf16, #tpu.memory_space<vmem>>, vector<16x8xbf16>
    %cst_16 = arith.constant dense<0.000000e+00> : vector<256x8xf32>
    %24 = tpu.matmul %22, %23, %cst_16 {dimension_numbers = #tpu.dot_dimension_numbers<[1], [0], [0], [1], [0, 0, 1, 1], [], []>} : vector<256x16xbf16>, vector<16x8xbf16>, vector<256x8xf32> -> vector<256x8xf32>
    %c0_17 = arith.constant 0 : index
    %c0_18 = arith.constant 0 : index
    %25 = vector.load %arg7[%c0_17, %c0_18] : memref<1x8xf32, #tpu.memory_space<vmem>>, vector<1x8xf32>
    %26 = vector.broadcast %25 : vector<1x8xf32> to vector<256x8xf32>
    %27 = arith.addf %24, %26 : vector<256x8xf32>
    %cst_19 = arith.constant 0.000000e+00 : f32
    %28 = vector.broadcast %cst_19 : f32 to vector<256x8xf32>
    %29 = arith.cmpf ogt, %27, %28 : vector<256x8xf32>
    %cst_20 = arith.constant 2.000000e-01 : f32
    %30 = vector.broadcast %cst_20 : f32 to vector<256x8xf32>
    %31 = arith.mulf %30, %27 : vector<256x8xf32>
    %32 = arith.select %29, %27, %31 : vector<256x8xi1>, vector<256x8xf32>
    %33 = arith.truncf %32 : vector<256x8xf32> to vector<256x8xbf16>
    %c0_21 = arith.constant 0 : index
    %c0_22 = arith.constant 0 : index
    %34 = vector.load %arg8[%c0_21, %c0_22] : memref<8x8xbf16, #tpu.memory_space<vmem>>, vector<8x8xbf16>
    %cst_23 = arith.constant dense<0.000000e+00> : vector<256x8xf32>
    %35 = tpu.matmul %33, %34, %cst_23 {dimension_numbers = #tpu.dot_dimension_numbers<[1], [0], [0], [1], [0, 0, 1, 1], [], []>} : vector<256x8xbf16>, vector<8x8xbf16>, vector<256x8xf32> -> vector<256x8xf32>
    %c0_24 = arith.constant 0 : index
    %c0_25 = arith.constant 0 : index
    %36 = vector.load %arg9[%c0_24, %c0_25] : memref<1x8xf32, #tpu.memory_space<vmem>>, vector<1x8xf32>
    %37 = vector.broadcast %36 : vector<1x8xf32> to vector<256x8xf32>
    %38 = arith.addf %35, %37 : vector<256x8xf32>
    %cst_26 = arith.constant 0.000000e+00 : f32
    %39 = vector.broadcast %cst_26 : f32 to vector<256x8xf32>
    %40 = arith.cmpf ogt, %38, %39 : vector<256x8xf32>
    %cst_27 = arith.constant 2.000000e-01 : f32
    %41 = vector.broadcast %cst_27 : f32 to vector<256x8xf32>
    %42 = arith.mulf %41, %38 : vector<256x8xf32>
    %43 = arith.select %40, %38, %42 : vector<256x8xi1>, vector<256x8xf32>
    %44 = arith.truncf %43 : vector<256x8xf32> to vector<256x8xbf16>
    %c0_28 = arith.constant 0 : index
    %c0_29 = arith.constant 0 : index
    %45 = vector.load %arg10[%c0_28, %c0_29] : memref<8x128xbf16, #tpu.memory_space<vmem>>, vector<8x128xbf16>
    %cst_30 = arith.constant dense<0.000000e+00> : vector<256x128xf32>
    %46 = tpu.matmul %44, %45, %cst_30 {dimension_numbers = #tpu.dot_dimension_numbers<[1], [0], [0], [1], [0, 0, 1, 1], [], []>} : vector<256x8xbf16>, vector<8x128xbf16>, vector<256x128xf32> -> vector<256x128xf32>
    %c0_31 = arith.constant 0 : index
    %c0_32 = arith.constant 0 : index
    %47 = vector.load %arg11[%c0_31, %c0_32] : memref<1x128xf32, #tpu.memory_space<vmem>>, vector<1x128xf32>
    %48 = vector.broadcast %47 : vector<1x128xf32> to vector<256x128xf32>
    %49 = arith.addf %46, %48 : vector<256x128xf32>
    %50 = arith.truncf %49 : vector<256x128xf32> to vector<256x128xbf16>
    %c0_33 = arith.constant 0 : index
    %c0_34 = arith.constant 0 : index
    %51 = vector.load %arg12[%c0_33, %c0_34] : memref<256x128xbf16, #tpu.memory_space<vmem>>, vector<256x128xbf16>
    tpu.vector_store %arg12[%c0_33, %c0_34], %50 {strides = array<i32>} : memref<256x128xbf16, #tpu.memory_space<vmem>>, vector<256x128xbf16>,
    return
  }
  func.func @transform_0(%arg0: i32) -> (i32, i32) {
    %c0_i32 = arith.constant 0 : i32
    %c0_i32_0 = arith.constant 0 : i32
    return %arg0, %c0_i32 : i32, i32
  }
  func.func @transform_1(%arg0: i32) -> (i32, i32) {
    %c0_i32 = arith.constant 0 : i32
    %c0_i32_0 = arith.constant 0 : i32
    %c0_i32_1 = arith.constant 0 : i32
    return %c0_i32, %c0_i32_0 : i32, i32
  }
  func.func @transform_2(%arg0: i32) -> (i32, i32) {
    %c0_i32 = arith.constant 0 : i32
    %c0_i32_0 = arith.constant 0 : i32
    %c0_i32_1 = arith.constant 0 : i32
    return %c0_i32, %c0_i32_0 : i32, i32
  }
  func.func @transform_3(%arg0: i32) -> (i32, i32) {
    %c0_i32 = arith.constant 0 : i32
    %c0_i32_0 = arith.constant 0 : i32
    %c0_i32_1 = arith.constant 0 : i32
    return %c0_i32, %c0_i32_0 : i32, i32
  }
  func.func @transform_4(%arg0: i32) -> (i32, i32) {
    %c0_i32 = arith.constant 0 : i32
    %c0_i32_0 = arith.constant 0 : i32
    %c0_i32_1 = arith.constant 0 : i32
    return %c0_i32, %c0_i32_0 : i32, i32
  }
  func.func @transform_5(%arg0: i32) -> (i32, i32) {
    %c0_i32 = arith.constant 0 : i32
    %c0_i32_0 = arith.constant 0 : i32
    %c0_i32_1 = arith.constant 0 : i32
    return %c0_i32, %c0_i32_0 : i32, i32
  }
  func.func @transform_6(%arg0: i32) -> (i32, i32) {
    %c0_i32 = arith.constant 0 : i32
    %c0_i32_0 = arith.constant 0 : i32
    %c0_i32_1 = arith.constant 0 : i32
    return %c0_i32, %c0_i32_0 : i32, i32
  }
  func.func @transform_7(%arg0: i32) -> (i32, i32) {
    %c0_i32 = arith.constant 0 : i32
    %c0_i32_0 = arith.constant 0 : i32
    %c0_i32_1 = arith.constant 0 : i32
    return %c0_i32, %c0_i32_0 : i32, i32
  }
  func.func @transform_8(%arg0: i32) -> (i32, i32) {
    %c0_i32 = arith.constant 0 : i32
    %c0_i32_0 = arith.constant 0 : i32
    %c0_i32_1 = arith.constant 0 : i32
    return %c0_i32, %c0_i32_0 : i32, i32
  }
  func.func @transform_9(%arg0: i32) -> (i32, i32) {
    %c0_i32 = arith.constant 0 : i32
    %c0_i32_0 = arith.constant 0 : i32
    %c0_i32_1 = arith.constant 0 : i32
    return %c0_i32, %c0_i32_0 : i32, i32
  }
  func.func @transform_10(%arg0: i32) -> (i32, i32) {
    %c0_i32 = arith.constant 0 : i32
    %c0_i32_0 = arith.constant 0 : i32
    %c0_i32_1 = arith.constant 0 : i32
    return %c0_i32, %c0_i32_0 : i32, i32
  }
  func.func @transform_11(%arg0: i32) -> (i32, i32) {
    %c0_i32 = arith.constant 0 : i32
    %c0_i32_0 = arith.constant 0 : i32
    return %arg0, %c0_i32 : i32, i32
  }
}

</mosaic_0001>

<llo_original>
// kernel: tpu_custom_call.1
$region0: #{tpu_custom_call.1}
  #allocation0 [shape = 'u32[]', space=smem, size = 0x4, offset = 0x4, fixed_abs, tag = 'smem constant byte address 0x4 - core index']
  #allocation1 [shape = 'u32[144,128]{1,0:T(1,128)}', space=vmem, size = 0x12000, scoped, tag = 'internal scratch']
  %s0 = inlined_call_operand.vmem [shape: bf16[256,32], index: 0, kind: input, shape index: {}]
  %s1 = inlined_call_operand.vmem [shape: bf16[32,16], index: 1, kind: input, shape index: {}]
  %s2 = inlined_call_operand.vmem [shape: f32[1,16], index: 2, kind: input, shape index: {}]
  %s3 = inlined_call_operand.vmem [shape: bf16[16,16], index: 3, kind: input, shape index: {}]
  %s4 = inlined_call_operand.vmem [shape: f32[1,16], index: 4, kind: input, shape index: {}]
  %s5 = inlined_call_operand.vmem [shape: bf16[16,8], index: 5, kind: input, shape index: {}]
  %s6 = inlined_call_operand.vmem [shape: f32[1,8], index: 6, kind: input, shape index: {}]
  %s7 = inlined_call_operand.vmem [shape: bf16[8,8], index: 7, kind: input, shape index: {}]
  %s8 = inlined_call_operand.vmem [shape: f32[1,8], index: 8, kind: input, shape index: {}]
  %s9 = inlined_call_operand.vmem [shape: bf16[8,128], index: 9, kind: input, shape index: {}]
  %s10 = inlined_call_operand.vmem [shape: f32[1,128], index: 10, kind: input, shape index: {}]
  %s11 = inlined_call_operand.hbm [shape: bf16[256,128], index: 11, kind: output, shape index: {}]
  %s12 = sld [smem:[#allocation0]]
  $region54: #{tpu_custom_call.1} parent=0
    _
  %s14 = ssub.s32 1, %s12
  %s15 = scalar_select 0, %s14, %s12
  $region1: #{tpu_custom_call.1} parent=0
    #allocation2 [shape = 'u8[65536]{0}', space=vmem, size = 0x10000, scoped, tag = 'output window, operand 0, single buffered']
    #allocation3 [shape = 's32[1]{0}', space=sflag, size = 0x4, scoped, tag = 'scoped memory for tpu_custom_call.1']
    %16 = vsyncpa [#allocation3], 0
    // Predicated region
    $region2: #{tpu_custom_call.1} parent=1 // pred_check
      _
    $region3: #{tpu_custom_call.1} parent=1 // pred_check_branch
      %18 = sbr.rel (0) target = $region5
    $region4: #{tpu_custom_call.1} parent=1 // pred_region
      _
    $region5: #{tpu_custom_call.1} parent=1 // pred_fallthru
      _
    // Predicated region
    $region6: #{tpu_custom_call.1} parent=1 // pred_check
      _
    $region7: #{tpu_custom_call.1} parent=1 // pred_check_branch
      %20 = sbr.rel (0) target = $region9
    $region8: #{tpu_custom_call.1} parent=1 // pred_region
      _
    $region9: #{tpu_custom_call.1} parent=1 // pred_fallthru
      _
    // Predicated region
    $region10: #{tpu_custom_call.1} parent=1 // pred_check
      _
    $region11: #{tpu_custom_call.1} parent=1 // pred_check_branch
      %22 = sbr.rel (0) target = $region13
    $region12: #{tpu_custom_call.1} parent=1 // pred_region
      _
    $region13: #{tpu_custom_call.1} parent=1 // pred_fallthru
      _
    // Predicated region
    $region14: #{tpu_custom_call.1} parent=1 // pred_check
      _
    $region15: #{tpu_custom_call.1} parent=1 // pred_check_branch
      %24 = sbr.rel (0) target = $region17
    $region16: #{tpu_custom_call.1} parent=1 // pred_region
      _
    $region17: #{tpu_custom_call.1} parent=1 // pred_fallthru
      _
    // Predicated region
    $region18: #{tpu_custom_call.1} parent=1 // pred_check
      _
    $region19: #{tpu_custom_call.1} parent=1 // pred_check_branch
      %26 = sbr.rel (0) target = $region21
    $region20: #{tpu_custom_call.1} parent=1 // pred_region
      _
    $region21: #{tpu_custom_call.1} parent=1 // pred_fallthru
      _
    // Predicated region
    $region22: #{tpu_custom_call.1} parent=1 // pred_check
      _
    $region23: #{tpu_custom_call.1} parent=1 // pred_check_branch
      %28 = sbr.rel (0) target = $region25
    $region24: #{tpu_custom_call.1} parent=1 // pred_region
      _
    $region25: #{tpu_custom_call.1} parent=1 // pred_fallthru
      _
    // Predicated region
    $region26: #{tpu_custom_call.1} parent=1 // pred_check
      _
    $region27: #{tpu_custom_call.1} parent=1 // pred_check_branch
      %30 = sbr.rel (0) target = $region29
    $region28: #{tpu_custom_call.1} parent=1 // pred_region
      _
    $region29: #{tpu_custom_call.1} parent=1 // pred_fallthru
      _
    // Predicated region
    $region30: #{tpu_custom_call.1} parent=1 // pred_check
      _
    $region31: #{tpu_custom_call.1} parent=1 // pred_check_branch
      %32 = sbr.rel (0) target = $region33
    $region32: #{tpu_custom_call.1} parent=1 // pred_region
      _
    $region33: #{tpu_custom_call.1} parent=1 // pred_fallthru
      _
    // Predicated region
    $region34: #{tpu_custom_call.1} parent=1 // pred_check
      _
    $region35: #{tpu_custom_call.1} parent=1 // pred_check_branch
      %34 = sbr.rel (0) target = $region37
    $region36: #{tpu_custom_call.1} parent=1 // pred_region
      _
    $region37: #{tpu_custom_call.1} parent=1 // pred_fallthru
      _
    // Predicated region
    $region38: #{tpu_custom_call.1} parent=1 // pred_check
      _
    $region39: #{tpu_custom_call.1} parent=1 // pred_check_branch
      %36 = sbr.rel (0) target = $region41
    $region40: #{tpu_custom_call.1} parent=1 // pred_region
      _
    $region41: #{tpu_custom_call.1} parent=1 // pred_fallthru
      _
    // Predicated region
    $region42: #{tpu_custom_call.1} parent=1 // pred_check
      _
    $region43: #{tpu_custom_call.1} parent=1 // pred_check_branch
      %38 = sbr.rel (0) target = $region45
    $region44: #{tpu_custom_call.1} parent=1 // pred_region
      _
    $region45: #{tpu_custom_call.1} parent=1 // pred_fallthru
      _
    %v40 = vld [vmem:[%s0] sm:$0xf]
    %v41 = vld [vmem:[%s0 + $0x4] sm:$0xf]
    %v42 = vld [vmem:[%s0 + $0x8] sm:$0xf]
    %v43 = vld [vmem:[%s0 + $0xc] sm:$0xf]
    %v44 = vld [vmem:[%s0 + $0x10] sm:$0xf]
    %v45 = vld [vmem:[%s0 + $0x14] sm:$0xf]
    %v46 = vld [vmem:[%s0 + $0x18] sm:$0xf]
    %v47 = vld [vmem:[%s0 + $0x1c] sm:$0xf]
    %v48 = vld [vmem:[%s0 + $0x20] sm:$0xf]
    %v49 = vld [vmem:[%s0 + $0x24] sm:$0xf]
    %v50 = vld [vmem:[%s0 + $0x28] sm:$0xf]
    %v51 = vld [vmem:[%s0 + $0x2c] sm:$0xf]
    %v52 = vld [vmem:[%s0 + $0x30] sm:$0xf]
    %v53 = vld [vmem:[%s0 + $0x34] sm:$0xf]
    %v54 = vld [vmem:[%s0 + $0x38] sm:$0xf]
    %v55 = vld [vmem:[%s0 + $0x3c] sm:$0xf]
    %v56 = vld [vmem:[%s0 + $0x40] sm:$0xf]
    %v57 = vld [vmem:[%s0 + $0x44] sm:$0xf]
    %v58 = vld [vmem:[%s0 + $0x48] sm:$0xf]
    %v59 = vld [vmem:[%s0 + $0x4c] sm:$0xf]
    %v60 = vld [vmem:[%s0 + $0x50] sm:$0xf]
    %v61 = vld [vmem:[%s0 + $0x54] sm:$0xf]
    %v62 = vld [vmem:[%s0 + $0x58] sm:$0xf]
    %v63 = vld [vmem:[%s0 + $0x5c] sm:$0xf]
    %v64 = vld [vmem:[%s0 + $0x60] sm:$0xf]
    %v65 = vld [vmem:[%s0 + $0x64] sm:$0xf]
    %v66 = vld [vmem:[%s0 + $0x68] sm:$0xf]
    %v67 = vld [vmem:[%s0 + $0x6c] sm:$0xf]
    %v68 = vld [vmem:[%s0 + $0x70] sm:$0xf]
    %v69 = vld [vmem:[%s0 + $0x74] sm:$0xf]
    %v70 = vld [vmem:[%s0 + $0x78] sm:$0xf]
    %v71 = vld [vmem:[%s0 + $0x7c] sm:$0xf]
    %v72 = vld [vmem:[%s1] sm:$0xf]
    %v73 = vld [vmem:[%s1 + $0x4] sm:$0xf]
    %v74 = vld [vmem:[%s1 + $0x8] sm:$0xf]
    %v75 = vld [vmem:[%s1 + $0xc] sm:$0xf]
    %v76 = vld [vmem:[%s2] sm:$0x1]
    %v78 = vlaneseq
    %v79 = vshrl.u32 %v78, 7
    %v80 = vsub.s32 0, %v79
    %v81 = vrot.slane %v76, %v80
    %v115 = vunpack.c.l.b16 %v40
    %v116 = vunpack.c.l.b16 %v41
    %v117 = vunpack.c.l.b16 %v42
    %v118 = vunpack.c.l.b16 %v43
    %v119 = vunpack.c.l.b16 %v44
    %v120 = vunpack.c.l.b16 %v45
    %v121 = vunpack.c.l.b16 %v46
    %v122 = vunpack.c.l.b16 %v47
    %v123 = vunpack.c.l.b16 %v48
    %v124 = vunpack.c.l.b16 %v49
    %v125 = vunpack.c.l.b16 %v50
    %v126 = vunpack.c.l.b16 %v51
    %v127 = vunpack.c.l.b16 %v52
    %v128 = vunpack.c.l.b16 %v53
    %v129 = vunpack.c.l.b16 %v54
    %v130 = vunpack.c.l.b16 %v55
    %v131 = vunpack.c.l.b16 %v56
    %v132 = vunpack.c.l.b16 %v57
    %v133 = vunpack.c.l.b16 %v58
    %v134 = vunpack.c.l.b16 %v59
    %v135 = vunpack.c.l.b16 %v60
    %v136 = vunpack.c.l.b16 %v61
    %v137 = vunpack.c.l.b16 %v62
    %v138 = vunpack.c.l.b16 %v63
    %v139 = vunpack.c.l.b16 %v64
    %v140 = vunpack.c.l.b16 %v65
    %v141 = vunpack.c.l.b16 %v66
    %v142 = vunpack.c.l.b16 %v67
    %v143 = vunpack.c.l.b16 %v68
    %v144 = vunpack.c.l.b16 %v69
    %v145 = vunpack.c.l.b16 %v70
    %v146 = vunpack.c.l.b16 %v71
    %v147 = vpack.c.b16 %v116, %v115
    %v148 = vpack.c.b16 %v118, %v117
    %v149 = vpack.c.b16 %v120, %v119
    %v150 = vpack.c.b16 %v122, %v121
    %v151 = vpack.c.b16 %v124, %v123
    %v152 = vpack.c.b16 %v126, %v125
    %v153 = vpack.c.b16 %v128, %v127
    %v154 = vpack.c.b16 %v130, %v129
    %v155 = vpack.c.b16 %v132, %v131
    %v156 = vpack.c.b16 %v134, %v133
    %v157 = vpack.c.b16 %v136, %v135
    %v158 = vpack.c.b16 %v138, %v137
    %v159 = vpack.c.b16 %v140, %v139
    %v160 = vpack.c.b16 %v142, %v141
    %v161 = vpack.c.b16 %v144, %v143
    %v162 = vpack.c.b16 %v146, %v145
    %v167 = vunpack.c.l.b16 %v72
    %v168 = vunpack.c.l.b16 %v73
    %v169 = vunpack.c.l.b16 %v74
    %v170 = vunpack.c.l.b16 %v75
    %v171 = vpack.c.b16 %v168, %v167
    %v172 = vpack.c.b16 %v170, %v169
    %vm175 = vcmask 261120
    %v177 = vsel %vm175, %v147, 0
    %v180 = vsel %vm175, %v148, 0
    %v183 = vsel %vm175, %v149, 0
    %v186 = vsel %vm175, %v150, 0
    %v189 = vsel %vm175, %v151, 0
    %v192 = vsel %vm175, %v152, 0
    %v195 = vsel %vm175, %v153, 0
    %v198 = vsel %vm175, %v154, 0
    %v201 = vsel %vm175, %v155, 0
    %v204 = vsel %vm175, %v156, 0
    %v207 = vsel %vm175, %v157, 0
    %v210 = vsel %vm175, %v158, 0
    %v213 = vsel %vm175, %v159, 0
    %v216 = vsel %vm175, %v160, 0
    %v219 = vsel %vm175, %v161, 0
    %v222 = vsel %vm175, %v162, 0
    %224 = vmatprep.subr.bf16.mxu0 0
    %225 = vmatpush1.bf16.msra.mxu0 %v171
    %226 = vmatprep.subr.bf16.mxu0 0
    %227 = vmatpush1.bf16.msra.mxu0 %v172
    %228 = vmatprep.subr.bf16.mxu0 0
    %229 = vmatpush1.bf16.msra.mxu0 0
    %230 = vmatprep.subr.bf16.mxu0 0
    %231 = vmatpush1.bf16.msra.mxu0 0
    %232 = vmatprep.subr.bf16.mxu0 0
    %233 = vmatpush1.bf16.msra.mxu0 0
    %234 = vmatprep.subr.bf16.mxu0 0
    %235 = vmatpush1.bf16.msra.mxu0 0
    %236 = vmatprep.subr.bf16.mxu0 0
    %237 = vmatpush1.bf16.msra.mxu0 0
    %238 = vmatprep.subr.bf16.mxu0 0
    %239 = vmatpush1.bf16.msra.mxu0 0
    %240 = vmatprep.subr.bf16.mxu0 0
    %241 = vmatpush1.bf16.msra.mxu0 0
    %242 = vmatprep.subr.bf16.mxu0 0
    %243 = vmatpush1.bf16.msra.mxu0 0
    %244 = vmatprep.subr.bf16.mxu0 0
    %245 = vmatpush1.bf16.msra.mxu0 0
    %246 = vmatprep.subr.bf16.mxu0 0
    %247 = vmatpush1.bf16.msra.mxu0 0
    %248 = vmatprep.subr.bf16.mxu0 0
    %249 = vmatpush1.bf16.msra.mxu0 0
    %250 = vmatprep.subr.bf16.mxu0 0
    %251 = vmatpush1.bf16.msra.mxu0 0
    %252 = vmatprep.subr.bf16.mxu0 0
    %253 = vmatpush1.bf16.msra.mxu0 0
    %254 = vmatprep.subr.bf16.mxu0 0
    %255 = vmatpush1.bf16.msra.mxu0 0
    %256 = vmatprep.mubr.bf16.mxu0 0
    %257 = vmatmul.mubr.bf16.gmra.mrb[0].mxu0 %v177
    %v258 = vpop.f32.mrb[0].mxu0
    %v259 = vadd.f32 %v81, %v258
    %v260 = vpop.f32.mrb[0].mxu0
    %v261 = vpop.f32.mrb[0].mxu0
    %v262 = vadd.f32 %v81, %v261
    %v263 = vpop.f32.mrb[0].mxu0
    %264 = vmatprep.mubr.bf16.mxu0 0
    %265 = vmatmul.mubr.bf16.gmra.mrb[0].mxu0 %v180
    %v266 = vpop.f32.mrb[0].mxu0
    %v267 = vadd.f32 %v81, %v266
    %v268 = vpop.f32.mrb[0].mxu0
    %v269 = vpop.f32.mrb[0].mxu0
    %v270 = vadd.f32 %v81, %v269
    %v271 = vpop.f32.mrb[0].mxu0
    %272 = vmatprep.mubr.bf16.mxu0 0
    %273 = vmatmul.mubr.bf16.gmra.mrb[0].mxu0 %v183
    %v274 = vpop.f32.mrb[0].mxu0
    %v275 = vadd.f32 %v81, %v274
    %v276 = vpop.f32.mrb[0].mxu0
    %v277 = vpop.f32.mrb[0].mxu0
    %v278 = vadd.f32 %v81, %v277
    %v279 = vpop.f32.mrb[0].mxu0
    %280 = vmatprep.mubr.bf16.mxu0 0
    %281 = vmatmul.mubr.bf16.gmra.mrb[0].mxu0 %v186
    %v282 = vpop.f32.mrb[0].mxu0
    %v283 = vadd.f32 %v81, %v282
    %v284 = vpop.f32.mrb[0].mxu0
    %v285 = vpop.f32.mrb[0].mxu0
    %v286 = vadd.f32 %v81, %v285
    %v287 = vpop.f32.mrb[0].mxu0
    %288 = vmatprep.mubr.bf16.mxu0 0
    %289 = vmatmul.mubr.bf16.gmra.mrb[0].mxu0 %v189
    %v290 = vpop.f32.mrb[0].mxu0
    %v291 = vadd.f32 %v81, %v290
    %v292 = vpop.f32.mrb[0].mxu0
    %v293 = vpop.f32.mrb[0].mxu0
    %v294 = vadd.f32 %v81, %v293
    %v295 = vpop.f32.mrb[0].mxu0
    %296 = vmatprep.mubr.bf16.mxu0 0
    %297 = vmatmul.mubr.bf16.gmra.mrb[0].mxu0 %v192
    %v298 = vpop.f32.mrb[0].mxu0
    %v299 = vadd.f32 %v81, %v298
    %v300 = vpop.f32.mrb[0].mxu0
    %v301 = vpop.f32.mrb[0].mxu0
    %v302 = vadd.f32 %v81, %v301
    %v303 = vpop.f32.mrb[0].mxu0
    %304 = vmatprep.mubr.bf16.mxu0 0
    %305 = vmatmul.mubr.bf16.gmra.mrb[0].mxu0 %v195
    %v306 = vpop.f32.mrb[0].mxu0
    %v307 = vadd.f32 %v81, %v306
    %v308 = vpop.f32.mrb[0].mxu0
    %v309 = vpop.f32.mrb[0].mxu0
    %v310 = vadd.f32 %v81, %v309
    %v311 = vpop.f32.mrb[0].mxu0
    %312 = vmatprep.mubr.bf16.mxu0 0
    %313 = vmatmul.mubr.bf16.gmra.mrb[0].mxu0 %v198
    %v314 = vpop.f32.mrb[0].mxu0
    %v315 = vadd.f32 %v81, %v314
    %v316 = vpop.f32.mrb[0].mxu0
    %v317 = vpop.f32.mrb[0].mxu0
    %v318 = vadd.f32 %v81, %v317
    %v319 = vpop.f32.mrb[0].mxu0
    %320 = vmatprep.mubr.bf16.mxu0 0
    %321 = vmatmul.mubr.bf16.gmra.mrb[0].mxu0 %v201
    %v322 = vpop.f32.mrb[0].mxu0
    %v323 = vadd.f32 %v81, %v322
    %v324 = vpop.f32.mrb[0].mxu0
    %v325 = vpop.f32.mrb[0].mxu0
    %v326 = vadd.f32 %v81, %v325
    %v327 = vpop.f32.mrb[0].mxu0
    %328 = vmatprep.mubr.bf16.mxu0 0
    %329 = vmatmul.mubr.bf16.gmra.mrb[0].mxu0 %v204
    %v330 = vpop.f32.mrb[0].mxu0
    %v331 = vadd.f32 %v81, %v330
    %v332 = vpop.f32.mrb[0].mxu0
    %v333 = vpop.f32.mrb[0].mxu0
    %v334 = vadd.f32 %v81, %v333
    %v335 = vpop.f32.mrb[0].mxu0
    %336 = vmatprep.mubr.bf16.mxu0 0
    %337 = vmatmul.mubr.bf16.gmra.mrb[0].mxu0 %v207
    %v338 = vpop.f32.mrb[0].mxu0
    %v339 = vadd.f32 %v81, %v338
    %v340 = vpop.f32.mrb[0].mxu0
    %v341 = vpop.f32.mrb[0].mxu0
    %v342 = vadd.f32 %v81, %v341
    %v343 = vpop.f32.mrb[0].mxu0
    %344 = vmatprep.mubr.bf16.mxu0 0
    %345 = vmatmul.mubr.bf16.gmra.mrb[0].mxu0 %v210
    %v346 = vpop.f32.mrb[0].mxu0
    %v347 = vadd.f32 %v81, %v346
    %v348 = vpop.f32.mrb[0].mxu0
    %v349 = vpop.f32.mrb[0].mxu0
    %v350 = vadd.f32 %v81, %v349
    %v351 = vpop.f32.mrb[0].mxu0
    %352 = vmatprep.mubr.bf16.mxu0 0
    %353 = vmatmul.mubr.bf16.gmra.mrb[0].mxu0 %v213
    %v354 = vpop.f32.mrb[0].mxu0
    %v355 = vadd.f32 %v81, %v354
    %v356 = vpop.f32.mrb[0].mxu0
    %v357 = vpop.f32.mrb[0].mxu0
    %v358 = vadd.f32 %v81, %v357
    %v359 = vpop.f32.mrb[0].mxu0
    %360 = vmatprep.mubr.bf16.mxu0 0
    %361 = vmatmul.mubr.bf16.gmra.mrb[0].mxu0 %v216
    %v362 = vpop.f32.mrb[0].mxu0
    %v363 = vadd.f32 %v81, %v362
    %v364 = vpop.f32.mrb[0].mxu0
    %v365 = vpop.f32.mrb[0].mxu0
    %v366 = vadd.f32 %v81, %v365
    %v367 = vpop.f32.mrb[0].mxu0
    %368 = vmatprep.mubr.bf16.mxu0 0
    %369 = vmatmul.mubr.bf16.gmra.mrb[0].mxu0 %v219
    %v370 = vpop.f32.mrb[0].mxu0
    %v371 = vadd.f32 %v81, %v370
    %v372 = vpop.f32.mrb[0].mxu0
    %v373 = vpop.f32.mrb[0].mxu0
    %v374 = vadd.f32 %v81, %v373
    %v375 = vpop.f32.mrb[0].mxu0
    %376 = vmatprep.mubr.bf16.mxu0 0
    %377 = vmatmul.mubr.bf16.gmra.mrb[0].mxu0 %v222
    %v378 = vpop.f32.mrb[0].mxu0
    %v379 = vadd.f32 %v81, %v378
    %v380 = vpop.f32.mrb[0].mxu0
    %v381 = vpop.f32.mrb[0].mxu0
    %v382 = vadd.f32 %v81, %v381
    %v383 = vpop.f32.mrb[0].mxu0
    %384 = vdwg.mxu0
    %vm385 = vcmp.gt.f32.partialorder %v259, 0.0
    %vm386 = vcmp.gt.f32.partialorder %v262, 0.0
    %vm387 = vcmp.gt.f32.partialorder %v267, 0.0
    %vm388 = vcmp.gt.f32.partialorder %v270, 0.0
    %vm389 = vcmp.gt.f32.partialorder %v275, 0.0
    %vm390 = vcmp.gt.f32.partialorder %v278, 0.0
    %vm391 = vcmp.gt.f32.partialorder %v283, 0.0
    %vm392 = vcmp.gt.f32.partialorder %v286, 0.0
    %vm393 = vcmp.gt.f32.partialorder %v291, 0.0
    %vm394 = vcmp.gt.f32.partialorder %v294, 0.0
    %vm395 = vcmp.gt.f32.partialorder %v299, 0.0
    %vm396 = vcmp.gt.f32.partialorder %v302, 0.0
    %vm397 = vcmp.gt.f32.partialorder %v307, 0.0
    %vm398 = vcmp.gt.f32.partialorder %v310, 0.0
    %vm399 = vcmp.gt.f32.partialorder %v315, 0.0
    %vm400 = vcmp.gt.f32.partialorder %v318, 0.0
    %vm401 = vcmp.gt.f32.partialorder %v323, 0.0
    %vm402 = vcmp.gt.f32.partialorder %v326, 0.0
    %vm403 = vcmp.gt.f32.partialorder %v331, 0.0
    %vm404 = vcmp.gt.f32.partialorder %v334, 0.0
    %vm405 = vcmp.gt.f32.partialorder %v339, 0.0
    %vm406 = vcmp.gt.f32.partialorder %v342, 0.0
    %vm407 = vcmp.gt.f32.partialorder %v347, 0.0
    %vm408 = vcmp.gt.f32.partialorder %v350, 0.0
    %vm409 = vcmp.gt.f32.partialorder %v355, 0.0
    %vm410 = vcmp.gt.f32.partialorder %v358, 0.0
    %vm411 = vcmp.gt.f32.partialorder %v363, 0.0
    %vm412 = vcmp.gt.f32.partialorder %v366, 0.0
    %vm413 = vcmp.gt.f32.partialorder %v371, 0.0
    %vm414 = vcmp.gt.f32.partialorder %v374, 0.0
    %vm415 = vcmp.gt.f32.partialorder %v379, 0.0
    %vm416 = vcmp.gt.f32.partialorder %v382, 0.0
    %v417 = vmul.f32 %v259, 0.2
    %v418 = vmul.f32 %v262, 0.2
    %v419 = vmul.f32 %v267, 0.2
    %v420 = vmul.f32 %v270, 0.2
    %v421 = vmul.f32 %v275, 0.2
    %v422 = vmul.f32 %v278, 0.2
    %v423 = vmul.f32 %v283, 0.2
    %v424 = vmul.f32 %v286, 0.2
    %v425 = vmul.f32 %v291, 0.2
    %v426 = vmul.f32 %v294, 0.2
    %v427 = vmul.f32 %v299, 0.2
    %v428 = vmul.f32 %v302, 0.2
    %v429 = vmul.f32 %v307, 0.2
    %v430 = vmul.f32 %v310, 0.2
    %v431 = vmul.f32 %v315, 0.2
    %v432 = vmul.f32 %v318, 0.2
    %v433 = vmul.f32 %v323, 0.2
    %v434 = vmul.f32 %v326, 0.2
    %v435 = vmul.f32 %v331, 0.2
    %v436 = vmul.f32 %v334, 0.2
    %v437 = vmul.f32 %v339, 0.2
    %v438 = vmul.f32 %v342, 0.2
    %v439 = vmul.f32 %v347, 0.2
    %v440 = vmul.f32 %v350, 0.2
    %v441 = vmul.f32 %v355, 0.2
    %v442 = vmul.f32 %v358, 0.2
    %v443 = vmul.f32 %v363, 0.2
    %v444 = vmul.f32 %v366, 0.2
    %v445 = vmul.f32 %v371, 0.2
    %v446 = vmul.f32 %v374, 0.2
    %v447 = vmul.f32 %v379, 0.2
    %v448 = vmul.f32 %v382, 0.2
    %v449 = vsel %vm385, %v259, %v417
    %v450 = vsel %vm386, %v262, %v418
    %v451 = vsel %vm387, %v267, %v419
    %v452 = vsel %vm388, %v270, %v420
    %v453 = vsel %vm389, %v275, %v421
    %v454 = vsel %vm390, %v278, %v422
    %v455 = vsel %vm391, %v283, %v423
    %v456 = vsel %vm392, %v286, %v424
    %v457 = vsel %vm393, %v291, %v425
    %v458 = vsel %vm394, %v294, %v426
    %v459 = vsel %vm395, %v299, %v427
    %v460 = vsel %vm396, %v302, %v428
    %v461 = vsel %vm397, %v307, %v429
    %v462 = vsel %vm398, %v310, %v430
    %v463 = vsel %vm399, %v315, %v431
    %v464 = vsel %vm400, %v318, %v432
    %v465 = vsel %vm401, %v323, %v433
    %v466 = vsel %vm402, %v326, %v434
    %v467 = vsel %vm403, %v331, %v435
    %v468 = vsel %vm404, %v334, %v436
    %v469 = vsel %vm405, %v339, %v437
    %v470 = vsel %vm406, %v342, %v438
    %v471 = vsel %vm407, %v347, %v439
    %v472 = vsel %vm408, %v350, %v440
    %v473 = vsel %vm409, %v355, %v441
    %v474 = vsel %vm410, %v358, %v442
    %v475 = vsel %vm411, %v363, %v443
    %v476 = vsel %vm412, %v366, %v444
    %v477 = vsel %vm413, %v371, %v445
    %v478 = vsel %vm414, %v374, %v446
    %v479 = vsel %vm415, %v379, %v447
    %v480 = vsel %vm416, %v382, %v448
    %v481 = vpack.c.bf16 %v450, %v449
    %v482 = vpack.c.bf16 %v452, %v451
    %v483 = vpack.c.bf16 %v454, %v453
    %v484 = vpack.c.bf16 %v456, %v455
    %v485 = vpack.c.bf16 %v458, %v457
    %v486 = vpack.c.bf16 %v460, %v459
    %v487 = vpack.c.bf16 %v462, %v461
    %v488 = vpack.c.bf16 %v464, %v463
    %v489 = vpack.c.bf16 %v466, %v465
    %v490 = vpack.c.bf16 %v468, %v467
    %v491 = vpack.c.bf16 %v470, %v469
    %v492 = vpack.c.bf16 %v472, %v471
    %v493 = vpack.c.bf16 %v474, %v473
    %v494 = vpack.c.bf16 %v476, %v475
    %v495 = vpack.c.bf16 %v478, %v477
    %v496 = vpack.c.bf16 %v480, %v479
    %v497 = vld [vmem:[%s3] sm:$0xf]
    %v498 = vld [vmem:[%s3 + $0x4] sm:$0xf]
    %v499 = vld [vmem:[%s4] sm:$0x1]
    %v501 = vlaneseq
    %v502 = vshrl.u32 %v501, 7
    %v503 = vsub.s32 0, %v502
    %v504 = vrot.slane %v499, %v503
    %v508 = vunpack.c.l.b16 %v497
    %v509 = vunpack.c.l.b16 %v498
    %v510 = vpack.c.b16 %v509, %v508
    %vm512 = vcmask 130048
    %v514 = vsel %vm512, %v481, 0
    %v517 = vsel %vm512, %v482, 0
    %v520 = vsel %vm512, %v483, 0
    %v523 = vsel %vm512, %v484, 0
    %v526 = vsel %vm512, %v485, 0
    %v529 = vsel %vm512, %v486, 0
    %v532 = vsel %vm512, %v487, 0
    %v535 = vsel %vm512, %v488, 0
    %v538 = vsel %vm512, %v489, 0
    %v541 = vsel %vm512, %v490, 0
    %v544 = vsel %vm512, %v491, 0
    %v547 = vsel %vm512, %v492, 0
    %v550 = vsel %vm512, %v493, 0
    %v553 = vsel %vm512, %v494, 0
    %v556 = vsel %vm512, %v495, 0
    %v559 = vsel %vm512, %v496, 0
    %561 = vmatprep.subr.bf16.mxu0 0
    %562 = vmatpush1.bf16.msra.mxu0 %v510
    %563 = vmatprep.subr.bf16.mxu0 0
    %564 = vmatpush1.bf16.msra.mxu0 0
    %565 = vmatprep.subr.bf16.mxu0 0
    %566 = vmatpush1.bf16.msra.mxu0 0
    %567 = vmatprep.subr.bf16.mxu0 0
    %568 = vmatpush1.bf16.msra.mxu0 0
    %569 = vmatprep.subr.bf16.mxu0 0
    %570 = vmatpush1.bf16.msra.mxu0 0
    %571 = vmatprep.subr.bf16.mxu0 0
    %572 = vmatpush1.bf16.msra.mxu0 0
    %573 = vmatprep.subr.bf16.mxu0 0
    %574 = vmatpush1.bf16.msra.mxu0 0
    %575 = vmatprep.subr.bf16.mxu0 0
    %576 = vmatpush1.bf16.msra.mxu0 0
    %577 = vmatprep.subr.bf16.mxu0 0
    %578 = vmatpush1.bf16.msra.mxu0 0
    %579 = vmatprep.subr.bf16.mxu0 0
    %580 = vmatpush1.bf16.msra.mxu0 0
    %581 = vmatprep.subr.bf16.mxu0 0
    %582 = vmatpush1.bf16.msra.mxu0 0
    %583 = vmatprep.subr.bf16.mxu0 0
    %584 = vmatpush1.bf16.msra.mxu0 0
    %585 = vmatprep.subr.bf16.mxu0 0
    %586 = vmatpush1.bf16.msra.mxu0 0
    %587 = vmatprep.subr.bf16.mxu0 0
    %588 = vmatpush1.bf16.msra.mxu0 0
    %589 = vmatprep.subr.bf16.mxu0 0
    %590 = vmatpush1.bf16.msra.mxu0 0
    %591 = vmatprep.subr.bf16.mxu0 0
    %592 = vmatpush1.bf16.msra.mxu0 0
    %593 = vmatprep.mubr.bf16.mxu0 0
    %594 = vmatmul.mubr.bf16.gmra.mrb[0].mxu0 %v514
    %v595 = vpop.f32.mrb[0].mxu0
    %v596 = vadd.f32 %v504, %v595
    %v597 = vpop.f32.mrb[0].mxu0
    %v598 = vpop.f32.mrb[0].mxu0
    %v599 = vadd.f32 %v504, %v598
    %v600 = vpop.f32.mrb[0].mxu0
    %601 = vmatprep.mubr.bf16.mxu0 0
    %602 = vmatmul.mubr.bf16.gmra.mrb[0].mxu0 %v517
    %v603 = vpop.f32.mrb[0].mxu0
    %v604 = vadd.f32 %v504, %v603
    %v605 = vpop.f32.mrb[0].mxu0
    %v606 = vpop.f32.mrb[0].mxu0
    %v607 = vadd.f32 %v504, %v606
    %v608 = vpop.f32.mrb[0].mxu0
    %609 = vmatprep.mubr.bf16.mxu0 0
    %610 = vmatmul.mubr.bf16.gmra.mrb[0].mxu0 %v520
    %v611 = vpop.f32.mrb[0].mxu0
    %v612 = vadd.f32 %v504, %v611
    %v613 = vpop.f32.mrb[0].mxu0
    %v614 = vpop.f32.mrb[0].mxu0
    %v615 = vadd.f32 %v504, %v614
    %v616 = vpop.f32.mrb[0].mxu0
    %617 = vmatprep.mubr.bf16.mxu0 0
    %618 = vmatmul.mubr.bf16.gmra.mrb[0].mxu0 %v523
    %v619 = vpop.f32.mrb[0].mxu0
    %v620 = vadd.f32 %v504, %v619
    %v621 = vpop.f32.mrb[0].mxu0
    %v622 = vpop.f32.mrb[0].mxu0
    %v623 = vadd.f32 %v504, %v622
    %v624 = vpop.f32.mrb[0].mxu0
    %625 = vmatprep.mubr.bf16.mxu0 0
    %626 = vmatmul.mubr.bf16.gmra.mrb[0].mxu0 %v526
    %v627 = vpop.f32.mrb[0].mxu0
    %v628 = vadd.f32 %v504, %v627
    %v629 = vpop.f32.mrb[0].mxu0
    %v630 = vpop.f32.mrb[0].mxu0
    %v631 = vadd.f32 %v504, %v630
    %v632 = vpop.f32.mrb[0].mxu0
    %633 = vmatprep.mubr.bf16.mxu0 0
    %634 = vmatmul.mubr.bf16.gmra.mrb[0].mxu0 %v529
    %v635 = vpop.f32.mrb[0].mxu0
    %v636 = vadd.f32 %v504, %v635
    %v637 = vpop.f32.mrb[0].mxu0
    %v638 = vpop.f32.mrb[0].mxu0
    %v639 = vadd.f32 %v504, %v638
    %v640 = vpop.f32.mrb[0].mxu0
    %641 = vmatprep.mubr.bf16.mxu0 0
    %642 = vmatmul.mubr.bf16.gmra.mrb[0].mxu0 %v532
    %v643 = vpop.f32.mrb[0].mxu0
    %v644 = vadd.f32 %v504, %v643
    %v645 = vpop.f32.mrb[0].mxu0
    %v646 = vpop.f32.mrb[0].mxu0
    %v647 = vadd.f32 %v504, %v646
    %v648 = vpop.f32.mrb[0].mxu0
    %649 = vmatprep.mubr.bf16.mxu0 0
    %650 = vmatmul.mubr.bf16.gmra.mrb[0].mxu0 %v535
    %v651 = vpop.f32.mrb[0].mxu0
    %v652 = vadd.f32 %v504, %v651
    %v653 = vpop.f32.mrb[0].mxu0
    %v654 = vpop.f32.mrb[0].mxu0
    %v655 = vadd.f32 %v504, %v654
    %v656 = vpop.f32.mrb[0].mxu0
    %657 = vmatprep.mubr.bf16.mxu0 0
    %658 = vmatmul.mubr.bf16.gmra.mrb[0].mxu0 %v538
    %v659 = vpop.f32.mrb[0].mxu0
    %v660 = vadd.f32 %v504, %v659
    %v661 = vpop.f32.mrb[0].mxu0
    %v662 = vpop.f32.mrb[0].mxu0
    %v663 = vadd.f32 %v504, %v662
    %v664 = vpop.f32.mrb[0].mxu0
    %665 = vmatprep.mubr.bf16.mxu0 0
    %666 = vmatmul.mubr.bf16.gmra.mrb[0].mxu0 %v541
    %v667 = vpop.f32.mrb[0].mxu0
    %v668 = vadd.f32 %v504, %v667
    %v669 = vpop.f32.mrb[0].mxu0
    %v670 = vpop.f32.mrb[0].mxu0
    %v671 = vadd.f32 %v504, %v670
    %v672 = vpop.f32.mrb[0].mxu0
    %673 = vmatprep.mubr.bf16.mxu0 0
    %674 = vmatmul.mubr.bf16.gmra.mrb[0].mxu0 %v544
    %v675 = vpop.f32.mrb[0].mxu0
    %v676 = vadd.f32 %v504, %v675
    %v677 = vpop.f32.mrb[0].mxu0
    %v678 = vpop.f32.mrb[0].mxu0
    %v679 = vadd.f32 %v504, %v678
    %v680 = vpop.f32.mrb[0].mxu0
    %681 = vmatprep.mubr.bf16.mxu0 0
    %682 = vmatmul.mubr.bf16.gmra.mrb[0].mxu0 %v547
    %v683 = vpop.f32.mrb[0].mxu0
    %v684 = vadd.f32 %v504, %v683
    %v685 = vpop.f32.mrb[0].mxu0
    %v686 = vpop.f32.mrb[0].mxu0
    %v687 = vadd.f32 %v504, %v686
    %v688 = vpop.f32.mrb[0].mxu0
    %689 = vmatprep.mubr.bf16.mxu0 0
    %690 = vmatmul.mubr.bf16.gmra.mrb[0].mxu0 %v550
    %v691 = vpop.f32.mrb[0].mxu0
    %v692 = vadd.f32 %v504, %v691
    %v693 = vpop.f32.mrb[0].mxu0
    %v694 = vpop.f32.mrb[0].mxu0
    %v695 = vadd.f32 %v504, %v694
    %v696 = vpop.f32.mrb[0].mxu0
    %697 = vmatprep.mubr.bf16.mxu0 0
    %698 = vmatmul.mubr.bf16.gmra.mrb[0].mxu0 %v553
    %v699 = vpop.f32.mrb[0].mxu0
    %v700 = vadd.f32 %v504, %v699
    %v701 = vpop.f32.mrb[0].mxu0
    %v702 = vpop.f32.mrb[0].mxu0
    %v703 = vadd.f32 %v504, %v702
    %v704 = vpop.f32.mrb[0].mxu0
    %705 = vmatprep.mubr.bf16.mxu0 0
    %706 = vmatmul.mubr.bf16.gmra.mrb[0].mxu0 %v556
    %v707 = vpop.f32.mrb[0].mxu0
    %v708 = vadd.f32 %v504, %v707
    %v709 = vpop.f32.mrb[0].mxu0
    %v710 = vpop.f32.mrb[0].mxu0
    %v711 = vadd.f32 %v504, %v710
    %v712 = vpop.f32.mrb[0].mxu0
    %713 = vmatprep.mubr.bf16.mxu0 0
    %714 = vmatmul.mubr.bf16.gmra.mrb[0].mxu0 %v559
    %v715 = vpop.f32.mrb[0].mxu0
    %v716 = vadd.f32 %v504, %v715
    %v717 = vpop.f32.mrb[0].mxu0
    %v718 = vpop.f32.mrb[0].mxu0
    %v719 = vadd.f32 %v504, %v718
    %v720 = vpop.f32.mrb[0].mxu0
    %721 = vdwg.mxu0
    %vm722 = vcmp.gt.f32.partialorder %v596, 0.0
    %vm723 = vcmp.gt.f32.partialorder %v599, 0.0
    %vm724 = vcmp.gt.f32.partialorder %v604, 0.0
    %vm725 = vcmp.gt.f32.partialorder %v607, 0.0
    %vm726 = vcmp.gt.f32.partialorder %v612, 0.0
    %vm727 = vcmp.gt.f32.partialorder %v615, 0.0
    %vm728 = vcmp.gt.f32.partialorder %v620, 0.0
    %vm729 = vcmp.gt.f32.partialorder %v623, 0.0
    %vm730 = vcmp.gt.f32.partialorder %v628, 0.0
    %vm731 = vcmp.gt.f32.partialorder %v631, 0.0
    %vm732 = vcmp.gt.f32.partialorder %v636, 0.0
    %vm733 = vcmp.gt.f32.partialorder %v639, 0.0
    %vm734 = vcmp.gt.f32.partialorder %v644, 0.0
    %vm735 = vcmp.gt.f32.partialorder %v647, 0.0
    %vm736 = vcmp.gt.f32.partialorder %v652, 0.0
    %vm737 = vcmp.gt.f32.partialorder %v655, 0.0
    %vm738 = vcmp.gt.f32.partialorder %v660, 0.0
    %vm739 = vcmp.gt.f32.partialorder %v663, 0.0
    %vm740 = vcmp.gt.f32.partialorder %v668, 0.0
    %vm741 = vcmp.gt.f32.partialorder %v671, 0.0
    %vm742 = vcmp.gt.f32.partialorder %v676, 0.0
    %vm743 = vcmp.gt.f32.partialorder %v679, 0.0
    %vm744 = vcmp.gt.f32.partialorder %v684, 0.0
    %vm745 = vcmp.gt.f32.partialorder %v687, 0.0
    %vm746 = vcmp.gt.f32.partialorder %v692, 0.0
    %vm747 = vcmp.gt.f32.partialorder %v695, 0.0
    %vm748 = vcmp.gt.f32.partialorder %v700, 0.0
    %vm749 = vcmp.gt.f32.partialorder %v703, 0.0
    %vm750 = vcmp.gt.f32.partialorder %v708, 0.0
    %vm751 = vcmp.gt.f32.partialorder %v711, 0.0
    %vm752 = vcmp.gt.f32.partialorder %v716, 0.0
    %vm753 = vcmp.gt.f32.partialorder %v719, 0.0
    %v754 = vmul.f32 %v596, 0.2
    %v755 = vmul.f32 %v599, 0.2
    %v756 = vmul.f32 %v604, 0.2
    %v757 = vmul.f32 %v607, 0.2
    %v758 = vmul.f32 %v612, 0.2
    %v759 = vmul.f32 %v615, 0.2
    %v760 = vmul.f32 %v620, 0.2
    %v761 = vmul.f32 %v623, 0.2
    %v762 = vmul.f32 %v628, 0.2
    %v763 = vmul.f32 %v631, 0.2
    %v764 = vmul.f32 %v636, 0.2
    %v765 = vmul.f32 %v639, 0.2
    %v766 = vmul.f32 %v644, 0.2
    %v767 = vmul.f32 %v647, 0.2
    %v768 = vmul.f32 %v652, 0.2
    %v769 = vmul.f32 %v655, 0.2
    %v770 = vmul.f32 %v660, 0.2
    %v771 = vmul.f32 %v663, 0.2
    %v772 = vmul.f32 %v668, 0.2
    %v773 = vmul.f32 %v671, 0.2
    %v774 = vmul.f32 %v676, 0.2
    %v775 = vmul.f32 %v679, 0.2
    %v776 = vmul.f32 %v684, 0.2
    %v777 = vmul.f32 %v687, 0.2
    %v778 = vmul.f32 %v692, 0.2
    %v779 = vmul.f32 %v695, 0.2
    %v780 = vmul.f32 %v700, 0.2
    %v781 = vmul.f32 %v703, 0.2
    %v782 = vmul.f32 %v708, 0.2
    %v783 = vmul.f32 %v711, 0.2
    %v784 = vmul.f32 %v716, 0.2
    %v785 = vmul.f32 %v719, 0.2
    %v786 = vsel %vm722, %v596, %v754
    %v787 = vsel %vm723, %v599, %v755
    %v788 = vsel %vm724, %v604, %v756
    %v789 = vsel %vm725, %v607, %v757
    %v790 = vsel %vm726, %v612, %v758
    %v791 = vsel %vm727, %v615, %v759
    %v792 = vsel %vm728, %v620, %v760
    %v793 = vsel %vm729, %v623, %v761
    %v794 = vsel %vm730, %v628, %v762
    %v795 = vsel %vm731, %v631, %v763
    %v796 = vsel %vm732, %v636, %v764
    %v797 = vsel %vm733, %v639, %v765
    %v798 = vsel %vm734, %v644, %v766
    %v799 = vsel %vm735, %v647, %v767
    %v800 = vsel %vm736, %v652, %v768
    %v801 = vsel %vm737, %v655, %v769
    %v802 = vsel %vm738, %v660, %v770
    %v803 = vsel %vm739, %v663, %v771
    %v804 = vsel %vm740, %v668, %v772
    %v805 = vsel %vm741, %v671, %v773
    %v806 = vsel %vm742, %v676, %v774
    %v807 = vsel %vm743, %v679, %v775
    %v808 = vsel %vm744, %v684, %v776
    %v809 = vsel %vm745, %v687, %v777
    %v810 = vsel %vm746, %v692, %v778
    %v811 = vsel %vm747, %v695, %v779
    %v812 = vsel %vm748, %v700, %v780
    %v813 = vsel %vm749, %v703, %v781
    %v814 = vsel %vm750, %v708, %v782
    %v815 = vsel %vm751, %v711, %v783
    %v816 = vsel %vm752, %v716, %v784
    %v817 = vsel %vm753, %v719, %v785
    %v818 = vpack.c.bf16 %v787, %v786
    %v819 = vpack.c.bf16 %v789, %v788
    %v820 = vpack.c.bf16 %v791, %v790
    %v821 = vpack.c.bf16 %v793, %v792
    %v822 = vpack.c.bf16 %v795, %v794
    %v823 = vpack.c.bf16 %v797, %v796
    %v824 = vpack.c.bf16 %v799, %v798
    %v825 = vpack.c.bf16 %v801, %v800
    %v826 = vpack.c.bf16 %v803, %v802
    %v827 = vpack.c.bf16 %v805, %v804
    %v828 = vpack.c.bf16 %v807, %v806
    %v829 = vpack.c.bf16 %v809, %v808
    %v830 = vpack.c.bf16 %v811, %v810
    %v831 = vpack.c.bf16 %v813, %v812
    %v832 = vpack.c.bf16 %v815, %v814
    %v833 = vpack.c.bf16 %v817, %v816
    %v834 = vld [vmem:[%s5] sm:$0xf]
    %v835 = vld [vmem:[%s5 + $0x4] sm:$0xf]
    %v836 = vld [vmem:[%s6] sm:$0x1]
    %v838 = vlaneseq
    %v839 = vshrl.u32 %v838, 7
    %v840 = vsub.s32 0, %v839
    %v841 = vrot.slane %v836, %v840
    %v845 = vunpack.c.l.b16 %v834
    %v846 = vunpack.c.l.b16 %v835
    %v847 = vpack.c.b16 %v846, %v845
    %v850 = vsel %vm512, %v818, 0
    %v853 = vsel %vm512, %v819, 0
    %v856 = vsel %vm512, %v820, 0
    %v859 = vsel %vm512, %v821, 0
    %v862 = vsel %vm512, %v822, 0
    %v865 = vsel %vm512, %v823, 0
    %v868 = vsel %vm512, %v824, 0
    %v871 = vsel %vm512, %v825, 0
    %v874 = vsel %vm512, %v826, 0
    %v877 = vsel %vm512, %v827, 0
    %v880 = vsel %vm512, %v828, 0
    %v883 = vsel %vm512, %v829, 0
    %v886 = vsel %vm512, %v830, 0
    %v889 = vsel %vm512, %v831, 0
    %v892 = vsel %vm512, %v832, 0
    %v895 = vsel %vm512, %v833, 0
    %897 = vmatprep.subr.bf16.mxu0 0
    %898 = vmatpush1.bf16.msra.mxu0 %v847
    %899 = vmatprep.subr.bf16.mxu0 0
    %900 = vmatpush1.bf16.msra.mxu0 0
    %901 = vmatprep.subr.bf16.mxu0 0
    %902 = vmatpush1.bf16.msra.mxu0 0
    %903 = vmatprep.subr.bf16.mxu0 0
    %904 = vmatpush1.bf16.msra.mxu0 0
    %905 = vmatprep.subr.bf16.mxu0 0
    %906 = vmatpush1.bf16.msra.mxu0 0
    %907 = vmatprep.subr.bf16.mxu0 0
    %908 = vmatpush1.bf16.msra.mxu0 0
    %909 = vmatprep.subr.bf16.mxu0 0
    %910 = vmatpush1.bf16.msra.mxu0 0
    %911 = vmatprep.subr.bf16.mxu0 0
    %912 = vmatpush1.bf16.msra.mxu0 0
    %913 = vmatprep.subr.bf16.mxu0 0
    %914 = vmatpush1.bf16.msra.mxu0 0
    %915 = vmatprep.subr.bf16.mxu0 0
    %916 = vmatpush1.bf16.msra.mxu0 0
    %917 = vmatprep.subr.bf16.mxu0 0
    %918 = vmatpush1.bf16.msra.mxu0 0
    %919 = vmatprep.subr.bf16.mxu0 0
    %920 = vmatpush1.bf16.msra.mxu0 0
    %921 = vmatprep.subr.bf16.mxu0 0
    %922 = vmatpush1.bf16.msra.mxu0 0
    %923 = vmatprep.subr.bf16.mxu0 0
    %924 = vmatpush1.bf16.msra.mxu0 0
    %925 = vmatprep.subr.bf16.mxu0 0
    %926 = vmatpush1.bf16.msra.mxu0 0
    %927 = vmatprep.subr.bf16.mxu0 0
    %928 = vmatpush1.bf16.msra.mxu0 0
    %929 = vmatprep.mubr.bf16.mxu0 0
    %930 = vmatmul.mubr.bf16.gmra.mrb[0].mxu0 %v850
    %v931 = vpop.f32.mrb[0].mxu0
    %v932 = vadd.f32 %v841, %v931
    %v933 = vpop.f32.mrb[0].mxu0
    %v934 = vpop.f32.mrb[0].mxu0
    %v935 = vadd.f32 %v841, %v934
    %v936 = vpop.f32.mrb[0].mxu0
    %937 = vmatprep.mubr.bf16.mxu0 0
    %938 = vmatmul.mubr.bf16.gmra.mrb[0].mxu0 %v853
    %v939 = vpop.f32.mrb[0].mxu0
    %v940 = vadd.f32 %v841, %v939
    %v941 = vpop.f32.mrb[0].mxu0
    %v942 = vpop.f32.mrb[0].mxu0
    %v943 = vadd.f32 %v841, %v942
    %v944 = vpop.f32.mrb[0].mxu0
    %945 = vmatprep.mubr.bf16.mxu0 0
    %946 = vmatmul.mubr.bf16.gmra.mrb[0].mxu0 %v856
    %v947 = vpop.f32.mrb[0].mxu0
    %v948 = vadd.f32 %v841, %v947
    %v949 = vpop.f32.mrb[0].mxu0
    %v950 = vpop.f32.mrb[0].mxu0
    %v951 = vadd.f32 %v841, %v950
    %v952 = vpop.f32.mrb[0].mxu0
    %953 = vmatprep.mubr.bf16.mxu0 0
    %954 = vmatmul.mubr.bf16.gmra.mrb[0].mxu0 %v859
    %v955 = vpop.f32.mrb[0].mxu0
    %v956 = vadd.f32 %v841, %v955
    %v957 = vpop.f32.mrb[0].mxu0
    %v958 = vpop.f32.mrb[0].mxu0
    %v959 = vadd.f32 %v841, %v958
    %v960 = vpop.f32.mrb[0].mxu0
    %961 = vmatprep.mubr.bf16.mxu0 0
    %962 = vmatmul.mubr.bf16.gmra.mrb[0].mxu0 %v862
    %v963 = vpop.f32.mrb[0].mxu0
    %v964 = vadd.f32 %v841, %v963
    %v965 = vpop.f32.mrb[0].mxu0
    %v966 = vpop.f32.mrb[0].mxu0
    %v967 = vadd.f32 %v841, %v966
    %v968 = vpop.f32.mrb[0].mxu0
    %969 = vmatprep.mubr.bf16.mxu0 0
    %970 = vmatmul.mubr.bf16.gmra.mrb[0].mxu0 %v865
    %v971 = vpop.f32.mrb[0].mxu0
    %v972 = vadd.f32 %v841, %v971
    %v973 = vpop.f32.mrb[0].mxu0
    %v974 = vpop.f32.mrb[0].mxu0
    %v975 = vadd.f32 %v841, %v974
    %v976 = vpop.f32.mrb[0].mxu0
    %977 = vmatprep.mubr.bf16.mxu0 0
    %978 = vmatmul.mubr.bf16.gmra.mrb[0].mxu0 %v868
    %v979 = vpop.f32.mrb[0].mxu0
    %v980 = vadd.f32 %v841, %v979
    %v981 = vpop.f32.mrb[0].mxu0
    %v982 = vpop.f32.mrb[0].mxu0
    %v983 = vadd.f32 %v841, %v982
    %v984 = vpop.f32.mrb[0].mxu0
    %985 = vmatprep.mubr.bf16.mxu0 0
    %986 = vmatmul.mubr.bf16.gmra.mrb[0].mxu0 %v871
    %v987 = vpop.f32.mrb[0].mxu0
    %v988 = vadd.f32 %v841, %v987
    %v989 = vpop.f32.mrb[0].mxu0
    %v990 = vpop.f32.mrb[0].mxu0
    %v991 = vadd.f32 %v841, %v990
    %v992 = vpop.f32.mrb[0].mxu0
    %993 = vmatprep.mubr.bf16.mxu0 0
    %994 = vmatmul.mubr.bf16.gmra.mrb[0].mxu0 %v874
    %v995 = vpop.f32.mrb[0].mxu0
    %v996 = vadd.f32 %v841, %v995
    %v997 = vpop.f32.mrb[0].mxu0
    %v998 = vpop.f32.mrb[0].mxu0
    %v999 = vadd.f32 %v841, %v998
    %v1000 = vpop.f32.mrb[0].mxu0
    %1001 = vmatprep.mubr.bf16.mxu0 0
    %1002 = vmatmul.mubr.bf16.gmra.mrb[0].mxu0 %v877
    %v1003 = vpop.f32.mrb[0].mxu0
    %v1004 = vadd.f32 %v841, %v1003
    %v1005 = vpop.f32.mrb[0].mxu0
    %v1006 = vpop.f32.mrb[0].mxu0
    %v1007 = vadd.f32 %v841, %v1006
    %v1008 = vpop.f32.mrb[0].mxu0
    %1009 = vmatprep.mubr.bf16.mxu0 0
    %1010 = vmatmul.mubr.bf16.gmra.mrb[0].mxu0 %v880
    %v1011 = vpop.f32.mrb[0].mxu0
    %v1012 = vadd.f32 %v841, %v1011
    %v1013 = vpop.f32.mrb[0].mxu0
    %v1014 = vpop.f32.mrb[0].mxu0
    %v1015 = vadd.f32 %v841, %v1014
    %v1016 = vpop.f32.mrb[0].mxu0
    %1017 = vmatprep.mubr.bf16.mxu0 0
    %1018 = vmatmul.mubr.bf16.gmra.mrb[0].mxu0 %v883
    %v1019 = vpop.f32.mrb[0].mxu0
    %v1020 = vadd.f32 %v841, %v1019
    %v1021 = vpop.f32.mrb[0].mxu0
    %v1022 = vpop.f32.mrb[0].mxu0
    %v1023 = vadd.f32 %v841, %v1022
    %v1024 = vpop.f32.mrb[0].mxu0
    %1025 = vmatprep.mubr.bf16.mxu0 0
    %1026 = vmatmul.mubr.bf16.gmra.mrb[0].mxu0 %v886
    %v1027 = vpop.f32.mrb[0].mxu0
    %v1028 = vadd.f32 %v841, %v1027
    %v1029 = vpop.f32.mrb[0].mxu0
    %v1030 = vpop.f32.mrb[0].mxu0
    %v1031 = vadd.f32 %v841, %v1030
    %v1032 = vpop.f32.mrb[0].mxu0
    %1033 = vmatprep.mubr.bf16.mxu0 0
    %1034 = vmatmul.mubr.bf16.gmra.mrb[0].mxu0 %v889
    %v1035 = vpop.f32.mrb[0].mxu0
    %v1036 = vadd.f32 %v841, %v1035
    %v1037 = vpop.f32.mrb[0].mxu0
    %v1038 = vpop.f32.mrb[0].mxu0
    %v1039 = vadd.f32 %v841, %v1038
    %v1040 = vpop.f32.mrb[0].mxu0
    %1041 = vmatprep.mubr.bf16.mxu0 0
    %1042 = vmatmul.mubr.bf16.gmra.mrb[0].mxu0 %v892
    %v1043 = vpop.f32.mrb[0].mxu0
    %v1044 = vadd.f32 %v841, %v1043
    %v1045 = vpop.f32.mrb[0].mxu0
    %v1046 = vpop.f32.mrb[0].mxu0
    %v1047 = vadd.f32 %v841, %v1046
    %v1048 = vpop.f32.mrb[0].mxu0
    %1049 = vmatprep.mubr.bf16.mxu0 0
    %1050 = vmatmul.mubr.bf16.gmra.mrb[0].mxu0 %v895
    %v1051 = vpop.f32.mrb[0].mxu0
    %v1052 = vadd.f32 %v841, %v1051
    %v1053 = vpop.f32.mrb[0].mxu0
    %v1054 = vpop.f32.mrb[0].mxu0
    %v1055 = vadd.f32 %v841, %v1054
    %v1056 = vpop.f32.mrb[0].mxu0
    %1057 = vdwg.mxu0
    %vm1058 = vcmp.gt.f32.partialorder %v932, 0.0
    %vm1059 = vcmp.gt.f32.partialorder %v935, 0.0
    %vm1060 = vcmp.gt.f32.partialorder %v940, 0.0
    %vm1061 = vcmp.gt.f32.partialorder %v943, 0.0
    %vm1062 = vcmp.gt.f32.partialorder %v948, 0.0
    %vm1063 = vcmp.gt.f32.partialorder %v951, 0.0
    %vm1064 = vcmp.gt.f32.partialorder %v956, 0.0
    %vm1065 = vcmp.gt.f32.partialorder %v959, 0.0
    %vm1066 = vcmp.gt.f32.partialorder %v964, 0.0
    %vm1067 = vcmp.gt.f32.partialorder %v967, 0.0
    %vm1068 = vcmp.gt.f32.partialorder %v972, 0.0
    %vm1069 = vcmp.gt.f32.partialorder %v975, 0.0
    %vm1070 = vcmp.gt.f32.partialorder %v980, 0.0
    %vm1071 = vcmp.gt.f32.partialorder %v983, 0.0
    %vm1072 = vcmp.gt.f32.partialorder %v988, 0.0
    %vm1073 = vcmp.gt.f32.partialorder %v991, 0.0
    %vm1074 = vcmp.gt.f32.partialorder %v996, 0.0
    %vm1075 = vcmp.gt.f32.partialorder %v999, 0.0
    %vm1076 = vcmp.gt.f32.partialorder %v1004, 0.0
    %vm1077 = vcmp.gt.f32.partialorder %v1007, 0.0
    %vm1078 = vcmp.gt.f32.partialorder %v1012, 0.0
    %vm1079 = vcmp.gt.f32.partialorder %v1015, 0.0
    %vm1080 = vcmp.gt.f32.partialorder %v1020, 0.0
    %vm1081 = vcmp.gt.f32.partialorder %v1023, 0.0
    %vm1082 = vcmp.gt.f32.partialorder %v1028, 0.0
    %vm1083 = vcmp.gt.f32.partialorder %v1031, 0.0
    %vm1084 = vcmp.gt.f32.partialorder %v1036, 0.0
    %vm1085 = vcmp.gt.f32.partialorder %v1039, 0.0
    %vm1086 = vcmp.gt.f32.partialorder %v1044, 0.0
    %vm1087 = vcmp.gt.f32.partialorder %v1047, 0.0
    %vm1088 = vcmp.gt.f32.partialorder %v1052, 0.0
    %vm1089 = vcmp.gt.f32.partialorder %v1055, 0.0
    %v1090 = vmul.f32 %v932, 0.2
    %v1091 = vmul.f32 %v935, 0.2
    %v1092 = vmul.f32 %v940, 0.2
    %v1093 = vmul.f32 %v943, 0.2
    %v1094 = vmul.f32 %v948, 0.2
    %v1095 = vmul.f32 %v951, 0.2
    %v1096 = vmul.f32 %v956, 0.2
    %v1097 = vmul.f32 %v959, 0.2
    %v1098 = vmul.f32 %v964, 0.2
    %v1099 = vmul.f32 %v967, 0.2
    %v1100 = vmul.f32 %v972, 0.2
    %v1101 = vmul.f32 %v975, 0.2
    %v1102 = vmul.f32 %v980, 0.2
    %v1103 = vmul.f32 %v983, 0.2
    %v1104 = vmul.f32 %v988, 0.2
    %v1105 = vmul.f32 %v991, 0.2
    %v1106 = vmul.f32 %v996, 0.2
    %v1107 = vmul.f32 %v999, 0.2
    %v1108 = vmul.f32 %v1004, 0.2
    %v1109 = vmul.f32 %v1007, 0.2
    %v1110 = vmul.f32 %v1012, 0.2
    %v1111 = vmul.f32 %v1015, 0.2
    %v1112 = vmul.f32 %v1020, 0.2
    %v1113 = vmul.f32 %v1023, 0.2
    %v1114 = vmul.f32 %v1028, 0.2
    %v1115 = vmul.f32 %v1031, 0.2
    %v1116 = vmul.f32 %v1036, 0.2
    %v1117 = vmul.f32 %v1039, 0.2
    %v1118 = vmul.f32 %v1044, 0.2
    %v1119 = vmul.f32 %v1047, 0.2
    %v1120 = vmul.f32 %v1052, 0.2
    %v1121 = vmul.f32 %v1055, 0.2
    %v1122 = vsel %vm1058, %v932, %v1090
    %v1123 = vsel %vm1059, %v935, %v1091
    %v1124 = vsel %vm1060, %v940, %v1092
    %v1125 = vsel %vm1061, %v943, %v1093
    %v1126 = vsel %vm1062, %v948, %v1094
    %v1127 = vsel %vm1063, %v951, %v1095
    %v1128 = vsel %vm1064, %v956, %v1096
    %v1129 = vsel %vm1065, %v959, %v1097
    %v1130 = vsel %vm1066, %v964, %v1098
    %v1131 = vsel %vm1067, %v967, %v1099
    %v1132 = vsel %vm1068, %v972, %v1100
    %v1133 = vsel %vm1069, %v975, %v1101
    %v1134 = vsel %vm1070, %v980, %v1102
    %v1135 = vsel %vm1071, %v983, %v1103
    %v1136 = vsel %vm1072, %v988, %v1104
    %v1137 = vsel %vm1073, %v991, %v1105
    %v1138 = vsel %vm1074, %v996, %v1106
    %v1139 = vsel %vm1075, %v999, %v1107
    %v1140 = vsel %vm1076, %v1004, %v1108
    %v1141 = vsel %vm1077, %v1007, %v1109
    %v1142 = vsel %vm1078, %v1012, %v1110
    %v1143 = vsel %vm1079, %v1015, %v1111
    %v1144 = vsel %vm1080, %v1020, %v1112
    %v1145 = vsel %vm1081, %v1023, %v1113
    %v1146 = vsel %vm1082, %v1028, %v1114
    %v1147 = vsel %vm1083, %v1031, %v1115
    %v1148 = vsel %vm1084, %v1036, %v1116
    %v1149 = vsel %vm1085, %v1039, %v1117
    %v1150 = vsel %vm1086, %v1044, %v1118
    %v1151 = vsel %vm1087, %v1047, %v1119
    %v1152 = vsel %vm1088, %v1052, %v1120
    %v1153 = vsel %vm1089, %v1055, %v1121
    %v1154 = vpack.c.bf16 %v1123, %v1122
    %v1155 = vpack.c.bf16 %v1125, %v1124
    %v1156 = vpack.c.bf16 %v1127, %v1126
    %v1157 = vpack.c.bf16 %v1129, %v1128
    %v1158 = vpack.c.bf16 %v1131, %v1130
    %v1159 = vpack.c.bf16 %v1133, %v1132
    %v1160 = vpack.c.bf16 %v1135, %v1134
    %v1161 = vpack.c.bf16 %v1137, %v1136
    %v1162 = vpack.c.bf16 %v1139, %v1138
    %v1163 = vpack.c.bf16 %v1141, %v1140
    %v1164 = vpack.c.bf16 %v1143, %v1142
    %v1165 = vpack.c.bf16 %v1145, %v1144
    %v1166 = vpack.c.bf16 %v1147, %v1146
    %v1167 = vpack.c.bf16 %v1149, %v1148
    %v1168 = vpack.c.bf16 %v1151, %v1150
    %v1169 = vpack.c.bf16 %v1153, %v1152
    %v1170 = vld [vmem:[%s7] sm:$0xf]
    %v1171 = vld [vmem:[%s8] sm:$0x1]
    %v1173 = vlaneseq
    %v1174 = vshrl.u32 %v1173, 7
    %v1175 = vsub.s32 0, %v1174
    %v1176 = vrot.slane %v1171, %v1175
    %vm1178 = vcmask 64512
    %v1180 = vsel %vm1178, %v1154, 0
    %v1183 = vsel %vm1178, %v1155, 0
    %v1186 = vsel %vm1178, %v1156, 0
    %v1189 = vsel %vm1178, %v1157, 0
    %v1192 = vsel %vm1178, %v1158, 0
    %v1195 = vsel %vm1178, %v1159, 0
    %v1198 = vsel %vm1178, %v1160, 0
    %v1201 = vsel %vm1178, %v1161, 0
    %v1204 = vsel %vm1178, %v1162, 0
    %v1207 = vsel %vm1178, %v1163, 0
    %v1210 = vsel %vm1178, %v1164, 0
    %v1213 = vsel %vm1178, %v1165, 0
    %v1216 = vsel %vm1178, %v1166, 0
    %v1219 = vsel %vm1178, %v1167, 0
    %v1222 = vsel %vm1178, %v1168, 0
    %v1225 = vsel %vm1178, %v1169, 0
    %vm1227 = vcmask 1043456
    %v1229 = vsel %vm1227, %v1170, 0
    %1231 = vmatprep.subr.bf16.mxu0 0
    %1232 = vmatpush1.bf16.msra.mxu0 %v1229
    %1233 = vmatprep.subr.bf16.mxu0 0
    %1234 = vmatpush1.bf16.msra.mxu0 0
    %1235 = vmatprep.subr.bf16.mxu0 0
    %1236 = vmatpush1.bf16.msra.mxu0 0
    %1237 = vmatprep.subr.bf16.mxu0 0
    %1238 = vmatpush1.bf16.msra.mxu0 0
    %1239 = vmatprep.subr.bf16.mxu0 0
    %1240 = vmatpush1.bf16.msra.mxu0 0
    %1241 = vmatprep.subr.bf16.mxu0 0
    %1242 = vmatpush1.bf16.msra.mxu0 0
    %1243 = vmatprep.subr.bf16.mxu0 0
    %1244 = vmatpush1.bf16.msra.mxu0 0
    %1245 = vmatprep.subr.bf16.mxu0 0
    %1246 = vmatpush1.bf16.msra.mxu0 0
    %1247 = vmatprep.subr.bf16.mxu0 0
    %1248 = vmatpush1.bf16.msra.mxu0 0
    %1249 = vmatprep.subr.bf16.mxu0 0
    %1250 = vmatpush1.bf16.msra.mxu0 0
    %1251 = vmatprep.subr.bf16.mxu0 0
    %1252 = vmatpush1.bf16.msra.mxu0 0
    %1253 = vmatprep.subr.bf16.mxu0 0
    %1254 = vmatpush1.bf16.msra.mxu0 0
    %1255 = vmatprep.subr.bf16.mxu0 0
    %1256 = vmatpush1.bf16.msra.mxu0 0
    %1257 = vmatprep.subr.bf16.mxu0 0
    %1258 = vmatpush1.bf16.msra.mxu0 0
    %1259 = vmatprep.subr.bf16.mxu0 0
    %1260 = vmatpush1.bf16.msra.mxu0 0
    %1261 = vmatprep.subr.bf16.mxu0 0
    %1262 = vmatpush1.bf16.msra.mxu0 0
    %1263 = vmatprep.mubr.bf16.mxu0 0
    %1264 = vmatmul.mubr.bf16.gmra.mrb[0].mxu0 %v1180
    %v1265 = vpop.f32.mrb[0].mxu0
    %v1266 = vadd.f32 %v1176, %v1265
    %v1267 = vpop.f32.mrb[0].mxu0
    %v1268 = vpop.f32.mrb[0].mxu0
    %v1269 = vadd.f32 %v1176, %v1268
    %v1270 = vpop.f32.mrb[0].mxu0
    %1271 = vmatprep.mubr.bf16.mxu0 0
    %1272 = vmatmul.mubr.bf16.gmra.mrb[0].mxu0 %v1183
    %v1273 = vpop.f32.mrb[0].mxu0
    %v1274 = vadd.f32 %v1176, %v1273
    %v1275 = vpop.f32.mrb[0].mxu0
    %v1276 = vpop.f32.mrb[0].mxu0
    %v1277 = vadd.f32 %v1176, %v1276
    %v1278 = vpop.f32.mrb[0].mxu0
    %1279 = vmatprep.mubr.bf16.mxu0 0
    %1280 = vmatmul.mubr.bf16.gmra.mrb[0].mxu0 %v1186
    %v1281 = vpop.f32.mrb[0].mxu0
    %v1282 = vadd.f32 %v1176, %v1281
    %v1283 = vpop.f32.mrb[0].mxu0
    %v1284 = vpop.f32.mrb[0].mxu0
    %v1285 = vadd.f32 %v1176, %v1284
    %v1286 = vpop.f32.mrb[0].mxu0
    %1287 = vmatprep.mubr.bf16.mxu0 0
    %1288 = vmatmul.mubr.bf16.gmra.mrb[0].mxu0 %v1189
    %v1289 = vpop.f32.mrb[0].mxu0
    %v1290 = vadd.f32 %v1176, %v1289
    %v1291 = vpop.f32.mrb[0].mxu0
    %v1292 = vpop.f32.mrb[0].mxu0
    %v1293 = vadd.f32 %v1176, %v1292
    %v1294 = vpop.f32.mrb[0].mxu0
    %1295 = vmatprep.mubr.bf16.mxu0 0
    %1296 = vmatmul.mubr.bf16.gmra.mrb[0].mxu0 %v1192
    %v1297 = vpop.f32.mrb[0].mxu0
    %v1298 = vadd.f32 %v1176, %v1297
    %v1299 = vpop.f32.mrb[0].mxu0
    %v1300 = vpop.f32.mrb[0].mxu0
    %v1301 = vadd.f32 %v1176, %v1300
    %v1302 = vpop.f32.mrb[0].mxu0
    %1303 = vmatprep.mubr.bf16.mxu0 0
    %1304 = vmatmul.mubr.bf16.gmra.mrb[0].mxu0 %v1195
    %v1305 = vpop.f32.mrb[0].mxu0
    %v1306 = vadd.f32 %v1176, %v1305
    %v1307 = vpop.f32.mrb[0].mxu0
    %v1308 = vpop.f32.mrb[0].mxu0
    %v1309 = vadd.f32 %v1176, %v1308
    %v1310 = vpop.f32.mrb[0].mxu0
    %1311 = vmatprep.mubr.bf16.mxu0 0
    %1312 = vmatmul.mubr.bf16.gmra.mrb[0].mxu0 %v1198
    %v1313 = vpop.f32.mrb[0].mxu0
    %v1314 = vadd.f32 %v1176, %v1313
    %v1315 = vpop.f32.mrb[0].mxu0
    %v1316 = vpop.f32.mrb[0].mxu0
    %v1317 = vadd.f32 %v1176, %v1316
    %v1318 = vpop.f32.mrb[0].mxu0
    %1319 = vmatprep.mubr.bf16.mxu0 0
    %1320 = vmatmul.mubr.bf16.gmra.mrb[0].mxu0 %v1201
    %v1321 = vpop.f32.mrb[0].mxu0
    %v1322 = vadd.f32 %v1176, %v1321
    %v1323 = vpop.f32.mrb[0].mxu0
    %v1324 = vpop.f32.mrb[0].mxu0
    %v1325 = vadd.f32 %v1176, %v1324
    %v1326 = vpop.f32.mrb[0].mxu0
    %1327 = vmatprep.mubr.bf16.mxu0 0
    %1328 = vmatmul.mubr.bf16.gmra.mrb[0].mxu0 %v1204
    %v1329 = vpop.f32.mrb[0].mxu0
    %v1330 = vadd.f32 %v1176, %v1329
    %v1331 = vpop.f32.mrb[0].mxu0
    %v1332 = vpop.f32.mrb[0].mxu0
    %v1333 = vadd.f32 %v1176, %v1332
    %v1334 = vpop.f32.mrb[0].mxu0
    %1335 = vmatprep.mubr.bf16.mxu0 0
    %1336 = vmatmul.mubr.bf16.gmra.mrb[0].mxu0 %v1207
    %v1337 = vpop.f32.mrb[0].mxu0
    %v1338 = vadd.f32 %v1176, %v1337
    %v1339 = vpop.f32.mrb[0].mxu0
    %v1340 = vpop.f32.mrb[0].mxu0
    %v1341 = vadd.f32 %v1176, %v1340
    %v1342 = vpop.f32.mrb[0].mxu0
    %1343 = vmatprep.mubr.bf16.mxu0 0
    %1344 = vmatmul.mubr.bf16.gmra.mrb[0].mxu0 %v1210
    %v1345 = vpop.f32.mrb[0].mxu0
    %v1346 = vadd.f32 %v1176, %v1345
    %v1347 = vpop.f32.mrb[0].mxu0
    %v1348 = vpop.f32.mrb[0].mxu0
    %v1349 = vadd.f32 %v1176, %v1348
    %v1350 = vpop.f32.mrb[0].mxu0
    %1351 = vmatprep.mubr.bf16.mxu0 0
    %1352 = vmatmul.mubr.bf16.gmra.mrb[0].mxu0 %v1213
    %v1353 = vpop.f32.mrb[0].mxu0
    %v1354 = vadd.f32 %v1176, %v1353
    %v1355 = vpop.f32.mrb[0].mxu0
    %v1356 = vpop.f32.mrb[0].mxu0
    %v1357 = vadd.f32 %v1176, %v1356
    %v1358 = vpop.f32.mrb[0].mxu0
    %1359 = vmatprep.mubr.bf16.mxu0 0
    %1360 = vmatmul.mubr.bf16.gmra.mrb[0].mxu0 %v1216
    %v1361 = vpop.f32.mrb[0].mxu0
    %v1362 = vadd.f32 %v1176, %v1361
    %v1363 = vpop.f32.mrb[0].mxu0
    %v1364 = vpop.f32.mrb[0].mxu0
    %v1365 = vadd.f32 %v1176, %v1364
    %v1366 = vpop.f32.mrb[0].mxu0
    %1367 = vmatprep.mubr.bf16.mxu0 0
    %1368 = vmatmul.mubr.bf16.gmra.mrb[0].mxu0 %v1219
    %v1369 = vpop.f32.mrb[0].mxu0
    %v1370 = vadd.f32 %v1176, %v1369
    %v1371 = vpop.f32.mrb[0].mxu0
    %v1372 = vpop.f32.mrb[0].mxu0
    %v1373 = vadd.f32 %v1176, %v1372
    %v1374 = vpop.f32.mrb[0].mxu0
    %1375 = vmatprep.mubr.bf16.mxu0 0
    %1376 = vmatmul.mubr.bf16.gmra.mrb[0].mxu0 %v1222
    %v1377 = vpop.f32.mrb[0].mxu0
    %v1378 = vadd.f32 %v1176, %v1377
    %v1379 = vpop.f32.mrb[0].mxu0
    %v1380 = vpop.f32.mrb[0].mxu0
    %v1381 = vadd.f32 %v1176, %v1380
    %v1382 = vpop.f32.mrb[0].mxu0
    %1383 = vmatprep.mubr.bf16.mxu0 0
    %1384 = vmatmul.mubr.bf16.gmra.mrb[0].mxu0 %v1225
    %v1385 = vpop.f32.mrb[0].mxu0
    %v1386 = vadd.f32 %v1176, %v1385
    %v1387 = vpop.f32.mrb[0].mxu0
    %v1388 = vpop.f32.mrb[0].mxu0
    %v1389 = vadd.f32 %v1176, %v1388
    %v1390 = vpop.f32.mrb[0].mxu0
    %1391 = vdwg.mxu0
    %vm1392 = vcmp.gt.f32.partialorder %v1266, 0.0
    %vm1393 = vcmp.gt.f32.partialorder %v1269, 0.0
    %vm1394 = vcmp.gt.f32.partialorder %v1274, 0.0
    %vm1395 = vcmp.gt.f32.partialorder %v1277, 0.0
    %vm1396 = vcmp.gt.f32.partialorder %v1282, 0.0
    %vm1397 = vcmp.gt.f32.partialorder %v1285, 0.0
    %vm1398 = vcmp.gt.f32.partialorder %v1290, 0.0
    %vm1399 = vcmp.gt.f32.partialorder %v1293, 0.0
    %vm1400 = vcmp.gt.f32.partialorder %v1298, 0.0
    %vm1401 = vcmp.gt.f32.partialorder %v1301, 0.0
    %vm1402 = vcmp.gt.f32.partialorder %v1306, 0.0
    %vm1403 = vcmp.gt.f32.partialorder %v1309, 0.0
    %vm1404 = vcmp.gt.f32.partialorder %v1314, 0.0
    %vm1405 = vcmp.gt.f32.partialorder %v1317, 0.0
    %vm1406 = vcmp.gt.f32.partialorder %v1322, 0.0
    %vm1407 = vcmp.gt.f32.partialorder %v1325, 0.0
    %vm1408 = vcmp.gt.f32.partialorder %v1330, 0.0
    %vm1409 = vcmp.gt.f32.partialorder %v1333, 0.0
    %vm1410 = vcmp.gt.f32.partialorder %v1338, 0.0
    %vm1411 = vcmp.gt.f32.partialorder %v1341, 0.0
    %vm1412 = vcmp.gt.f32.partialorder %v1346, 0.0
    %vm1413 = vcmp.gt.f32.partialorder %v1349, 0.0
    %vm1414 = vcmp.gt.f32.partialorder %v1354, 0.0
    %vm1415 = vcmp.gt.f32.partialorder %v1357, 0.0
    %vm1416 = vcmp.gt.f32.partialorder %v1362, 0.0
    %vm1417 = vcmp.gt.f32.partialorder %v1365, 0.0
    %vm1418 = vcmp.gt.f32.partialorder %v1370, 0.0
    %vm1419 = vcmp.gt.f32.partialorder %v1373, 0.0
    %vm1420 = vcmp.gt.f32.partialorder %v1378, 0.0
    %vm1421 = vcmp.gt.f32.partialorder %v1381, 0.0
    %vm1422 = vcmp.gt.f32.partialorder %v1386, 0.0
    %vm1423 = vcmp.gt.f32.partialorder %v1389, 0.0
    %v1424 = vmul.f32 %v1266, 0.2
    %v1425 = vmul.f32 %v1269, 0.2
    %v1426 = vmul.f32 %v1274, 0.2
    %v1427 = vmul.f32 %v1277, 0.2
    %v1428 = vmul.f32 %v1282, 0.2
    %v1429 = vmul.f32 %v1285, 0.2
    %v1430 = vmul.f32 %v1290, 0.2
    %v1431 = vmul.f32 %v1293, 0.2
    %v1432 = vmul.f32 %v1298, 0.2
    %v1433 = vmul.f32 %v1301, 0.2
    %v1434 = vmul.f32 %v1306, 0.2
    %v1435 = vmul.f32 %v1309, 0.2
    %v1436 = vmul.f32 %v1314, 0.2
    %v1437 = vmul.f32 %v1317, 0.2
    %v1438 = vmul.f32 %v1322, 0.2
    %v1439 = vmul.f32 %v1325, 0.2
    %v1440 = vmul.f32 %v1330, 0.2
    %v1441 = vmul.f32 %v1333, 0.2
    %v1442 = vmul.f32 %v1338, 0.2
    %v1443 = vmul.f32 %v1341, 0.2
    %v1444 = vmul.f32 %v1346, 0.2
    %v1445 = vmul.f32 %v1349, 0.2
    %v1446 = vmul.f32 %v1354, 0.2
    %v1447 = vmul.f32 %v1357, 0.2
    %v1448 = vmul.f32 %v1362, 0.2
    %v1449 = vmul.f32 %v1365, 0.2
    %v1450 = vmul.f32 %v1370, 0.2
    %v1451 = vmul.f32 %v1373, 0.2
    %v1452 = vmul.f32 %v1378, 0.2
    %v1453 = vmul.f32 %v1381, 0.2
    %v1454 = vmul.f32 %v1386, 0.2
    %v1455 = vmul.f32 %v1389, 0.2
    %v1456 = vsel %vm1392, %v1266, %v1424
    %v1457 = vsel %vm1393, %v1269, %v1425
    %v1458 = vsel %vm1394, %v1274, %v1426
    %v1459 = vsel %vm1395, %v1277, %v1427
    %v1460 = vsel %vm1396, %v1282, %v1428
    %v1461 = vsel %vm1397, %v1285, %v1429
    %v1462 = vsel %vm1398, %v1290, %v1430
    %v1463 = vsel %vm1399, %v1293, %v1431
    %v1464 = vsel %vm1400, %v1298, %v1432
    %v1465 = vsel %vm1401, %v1301, %v1433
    %v1466 = vsel %vm1402, %v1306, %v1434
    %v1467 = vsel %vm1403, %v1309, %v1435
    %v1468 = vsel %vm1404, %v1314, %v1436
    %v1469 = vsel %vm1405, %v1317, %v1437
    %v1470 = vsel %vm1406, %v1322, %v1438
    %v1471 = vsel %vm1407, %v1325, %v1439
    %v1472 = vsel %vm1408, %v1330, %v1440
    %v1473 = vsel %vm1409, %v1333, %v1441
    %v1474 = vsel %vm1410, %v1338, %v1442
    %v1475 = vsel %vm1411, %v1341, %v1443
    %v1476 = vsel %vm1412, %v1346, %v1444
    %v1477 = vsel %vm1413, %v1349, %v1445
    %v1478 = vsel %vm1414, %v1354, %v1446
    %v1479 = vsel %vm1415, %v1357, %v1447
    %v1480 = vsel %vm1416, %v1362, %v1448
    %v1481 = vsel %vm1417, %v1365, %v1449
    %v1482 = vsel %vm1418, %v1370, %v1450
    %v1483 = vsel %vm1419, %v1373, %v1451
    %v1484 = vsel %vm1420, %v1378, %v1452
    %v1485 = vsel %vm1421, %v1381, %v1453
    %v1486 = vsel %vm1422, %v1386, %v1454
    %v1487 = vsel %vm1423, %v1389, %v1455
    %v1488 = vpack.c.bf16 %v1457, %v1456
    %v1489 = vpack.c.bf16 %v1459, %v1458
    %v1490 = vpack.c.bf16 %v1461, %v1460
    %v1491 = vpack.c.bf16 %v1463, %v1462
    %v1492 = vpack.c.bf16 %v1465, %v1464
    %v1493 = vpack.c.bf16 %v1467, %v1466
    %v1494 = vpack.c.bf16 %v1469, %v1468
    %v1495 = vpack.c.bf16 %v1471, %v1470
    %v1496 = vpack.c.bf16 %v1473, %v1472
    %v1497 = vpack.c.bf16 %v1475, %v1474
    %v1498 = vpack.c.bf16 %v1477, %v1476
    %v1499 = vpack.c.bf16 %v1479, %v1478
    %v1500 = vpack.c.bf16 %v1481, %v1480
    %v1501 = vpack.c.bf16 %v1483, %v1482
    %v1502 = vpack.c.bf16 %v1485, %v1484
    %v1503 = vpack.c.bf16 %v1487, %v1486
    %v1504 = vld [vmem:[%s9] sm:$0xf]
    %v1505 = vld [vmem:[%s10] sm:$0x1]
    %v1507 = vlaneseq
    %v1508 = vshrl.u32 %v1507, 7
    %v1509 = vsub.s32 0, %v1508
    %v1510 = vrot.slane %v1505, %v1509
    %v1513 = vsel %vm1178, %v1488, 0
    %v1516 = vsel %vm1178, %v1489, 0
    %v1519 = vsel %vm1178, %v1490, 0
    %v1522 = vsel %vm1178, %v1491, 0
    %v1525 = vsel %vm1178, %v1492, 0
    %v1528 = vsel %vm1178, %v1493, 0
    %v1531 = vsel %vm1178, %v1494, 0
    %v1534 = vsel %vm1178, %v1495, 0
    %v1537 = vsel %vm1178, %v1496, 0
    %v1540 = vsel %vm1178, %v1497, 0
    %v1543 = vsel %vm1178, %v1498, 0
    %v1546 = vsel %vm1178, %v1499, 0
    %v1549 = vsel %vm1178, %v1500, 0
    %v1552 = vsel %vm1178, %v1501, 0
    %v1555 = vsel %vm1178, %v1502, 0
    %v1558 = vsel %vm1178, %v1503, 0
    %v1561 = vsel %vm1227, %v1504, 0
    %1563 = vmatprep.subr.bf16.mxu0 0
    %1564 = vmatpush1.bf16.msra.mxu0 %v1561
    %1565 = vmatprep.subr.bf16.mxu0 0
    %1566 = vmatpush1.bf16.msra.mxu0 0
    %1567 = vmatprep.subr.bf16.mxu0 0
    %1568 = vmatpush1.bf16.msra.mxu0 0
    %1569 = vmatprep.subr.bf16.mxu0 0
    %1570 = vmatpush1.bf16.msra.mxu0 0
    %1571 = vmatprep.subr.bf16.mxu0 0
    %1572 = vmatpush1.bf16.msra.mxu0 0
    %1573 = vmatprep.subr.bf16.mxu0 0
    %1574 = vmatpush1.bf16.msra.mxu0 0
    %1575 = vmatprep.subr.bf16.mxu0 0
    %1576 = vmatpush1.bf16.msra.mxu0 0
    %1577 = vmatprep.subr.bf16.mxu0 0
    %1578 = vmatpush1.bf16.msra.mxu0 0
    %1579 = vmatprep.subr.bf16.mxu0 0
    %1580 = vmatpush1.bf16.msra.mxu0 0
    %1581 = vmatprep.subr.bf16.mxu0 0
    %1582 = vmatpush1.bf16.msra.mxu0 0
    %1583 = vmatprep.subr.bf16.mxu0 0
    %1584 = vmatpush1.bf16.msra.mxu0 0
    %1585 = vmatprep.subr.bf16.mxu0 0
    %1586 = vmatpush1.bf16.msra.mxu0 0
    %1587 = vmatprep.subr.bf16.mxu0 0
    %1588 = vmatpush1.bf16.msra.mxu0 0
    %1589 = vmatprep.subr.bf16.mxu0 0
    %1590 = vmatpush1.bf16.msra.mxu0 0
    %1591 = vmatprep.subr.bf16.mxu0 0
    %1592 = vmatpush1.bf16.msra.mxu0 0
    %1593 = vmatprep.subr.bf16.mxu0 0
    %1594 = vmatpush1.bf16.msra.mxu0 0
    %1595 = vmatprep.mubr.bf16.mxu0 0
    %1596 = vmatmul.mubr.bf16.gmra.mrb[0].mxu0 %v1513
    %v1597 = vpop.f32.mrb[0].mxu0
    %v1598 = vadd.f32 %v1510, %v1597
    %v1599 = vpop.f32.mrb[0].mxu0
    %v1600 = vpop.f32.mrb[0].mxu0
    %v1601 = vadd.f32 %v1510, %v1600
    %v1602 = vpop.f32.mrb[0].mxu0
    %1603 = vmatprep.mubr.bf16.mxu0 0
    %1604 = vmatmul.mubr.bf16.gmra.mrb[0].mxu0 %v1516
    %v1605 = vpop.f32.mrb[0].mxu0
    %v1606 = vadd.f32 %v1510, %v1605
    %v1607 = vpop.f32.mrb[0].mxu0
    %v1608 = vpop.f32.mrb[0].mxu0
    %v1609 = vadd.f32 %v1510, %v1608
    %v1610 = vpop.f32.mrb[0].mxu0
    %1611 = vmatprep.mubr.bf16.mxu0 0
    %1612 = vmatmul.mubr.bf16.gmra.mrb[0].mxu0 %v1519
    %v1613 = vpop.f32.mrb[0].mxu0
    %v1614 = vadd.f32 %v1510, %v1613
    %v1615 = vpop.f32.mrb[0].mxu0
    %v1616 = vpop.f32.mrb[0].mxu0
    %v1617 = vadd.f32 %v1510, %v1616
    %v1618 = vpop.f32.mrb[0].mxu0
    %1619 = vmatprep.mubr.bf16.mxu0 0
    %1620 = vmatmul.mubr.bf16.gmra.mrb[0].mxu0 %v1522
    %v1621 = vpop.f32.mrb[0].mxu0
    %v1622 = vadd.f32 %v1510, %v1621
    %v1623 = vpop.f32.mrb[0].mxu0
    %v1624 = vpop.f32.mrb[0].mxu0
    %v1625 = vadd.f32 %v1510, %v1624
    %v1626 = vpop.f32.mrb[0].mxu0
    %1627 = vmatprep.mubr.bf16.mxu0 0
    %1628 = vmatmul.mubr.bf16.gmra.mrb[0].mxu0 %v1525
    %v1629 = vpop.f32.mrb[0].mxu0
    %v1630 = vadd.f32 %v1510, %v1629
    %v1631 = vpop.f32.mrb[0].mxu0
    %v1632 = vpop.f32.mrb[0].mxu0
    %v1633 = vadd.f32 %v1510, %v1632
    %v1634 = vpop.f32.mrb[0].mxu0
    %1635 = vmatprep.mubr.bf16.mxu0 0
    %1636 = vmatmul.mubr.bf16.gmra.mrb[0].mxu0 %v1528
    %v1637 = vpop.f32.mrb[0].mxu0
    %v1638 = vadd.f32 %v1510, %v1637
    %v1639 = vpop.f32.mrb[0].mxu0
    %v1640 = vpop.f32.mrb[0].mxu0
    %v1641 = vadd.f32 %v1510, %v1640
    %v1642 = vpop.f32.mrb[0].mxu0
    %1643 = vmatprep.mubr.bf16.mxu0 0
    %1644 = vmatmul.mubr.bf16.gmra.mrb[0].mxu0 %v1531
    %v1645 = vpop.f32.mrb[0].mxu0
    %v1646 = vadd.f32 %v1510, %v1645
    %v1647 = vpop.f32.mrb[0].mxu0
    %v1648 = vpop.f32.mrb[0].mxu0
    %v1649 = vadd.f32 %v1510, %v1648
    %v1650 = vpop.f32.mrb[0].mxu0
    %1651 = vmatprep.mubr.bf16.mxu0 0
    %1652 = vmatmul.mubr.bf16.gmra.mrb[0].mxu0 %v1534
    %v1653 = vpop.f32.mrb[0].mxu0
    %v1654 = vadd.f32 %v1510, %v1653
    %v1655 = vpop.f32.mrb[0].mxu0
    %v1656 = vpop.f32.mrb[0].mxu0
    %v1657 = vadd.f32 %v1510, %v1656
    %v1658 = vpop.f32.mrb[0].mxu0
    %1659 = vmatprep.mubr.bf16.mxu0 0
    %1660 = vmatmul.mubr.bf16.gmra.mrb[0].mxu0 %v1537
    %v1661 = vpop.f32.mrb[0].mxu0
    %v1662 = vadd.f32 %v1510, %v1661
    %v1663 = vpop.f32.mrb[0].mxu0
    %v1664 = vpop.f32.mrb[0].mxu0
    %v1665 = vadd.f32 %v1510, %v1664
    %v1666 = vpop.f32.mrb[0].mxu0
    %1667 = vmatprep.mubr.bf16.mxu0 0
    %1668 = vmatmul.mubr.bf16.gmra.mrb[0].mxu0 %v1540
    %v1669 = vpop.f32.mrb[0].mxu0
    %v1670 = vadd.f32 %v1510, %v1669
    %v1671 = vpop.f32.mrb[0].mxu0
    %v1672 = vpop.f32.mrb[0].mxu0
    %v1673 = vadd.f32 %v1510, %v1672
    %v1674 = vpop.f32.mrb[0].mxu0
    %1675 = vmatprep.mubr.bf16.mxu0 0
    %1676 = vmatmul.mubr.bf16.gmra.mrb[0].mxu0 %v1543
    %v1677 = vpop.f32.mrb[0].mxu0
    %v1678 = vadd.f32 %v1510, %v1677
    %v1679 = vpop.f32.mrb[0].mxu0
    %v1680 = vpop.f32.mrb[0].mxu0
    %v1681 = vadd.f32 %v1510, %v1680
    %v1682 = vpop.f32.mrb[0].mxu0
    %1683 = vmatprep.mubr.bf16.mxu0 0
    %1684 = vmatmul.mubr.bf16.gmra.mrb[0].mxu0 %v1546
    %v1685 = vpop.f32.mrb[0].mxu0
    %v1686 = vadd.f32 %v1510, %v1685
    %v1687 = vpop.f32.mrb[0].mxu0
    %v1688 = vpop.f32.mrb[0].mxu0
    %v1689 = vadd.f32 %v1510, %v1688
    %v1690 = vpop.f32.mrb[0].mxu0
    %1691 = vmatprep.mubr.bf16.mxu0 0
    %1692 = vmatmul.mubr.bf16.gmra.mrb[0].mxu0 %v1549
    %v1693 = vpop.f32.mrb[0].mxu0
    %v1694 = vadd.f32 %v1510, %v1693
    %v1695 = vpop.f32.mrb[0].mxu0
    %v1696 = vpop.f32.mrb[0].mxu0
    %v1697 = vadd.f32 %v1510, %v1696
    %v1698 = vpop.f32.mrb[0].mxu0
    %1699 = vmatprep.mubr.bf16.mxu0 0
    %1700 = vmatmul.mubr.bf16.gmra.mrb[0].mxu0 %v1552
    %v1701 = vpop.f32.mrb[0].mxu0
    %v1702 = vadd.f32 %v1510, %v1701
    %v1703 = vpop.f32.mrb[0].mxu0
    %v1704 = vpop.f32.mrb[0].mxu0
    %v1705 = vadd.f32 %v1510, %v1704
    %v1706 = vpop.f32.mrb[0].mxu0
    %1707 = vmatprep.mubr.bf16.mxu0 0
    %1708 = vmatmul.mubr.bf16.gmra.mrb[0].mxu0 %v1555
    %v1709 = vpop.f32.mrb[0].mxu0
    %v1710 = vadd.f32 %v1510, %v1709
    %v1711 = vpop.f32.mrb[0].mxu0
    %v1712 = vpop.f32.mrb[0].mxu0
    %v1713 = vadd.f32 %v1510, %v1712
    %v1714 = vpop.f32.mrb[0].mxu0
    %1715 = vmatprep.mubr.bf16.mxu0 0
    %1716 = vmatmul.mubr.bf16.gmra.mrb[0].mxu0 %v1558
    %v1717 = vpop.f32.mrb[0].mxu0
    %v1718 = vadd.f32 %v1510, %v1717
    %v1719 = vpop.f32.mrb[0].mxu0
    %v1720 = vpop.f32.mrb[0].mxu0
    %v1721 = vadd.f32 %v1510, %v1720
    %v1722 = vpop.f32.mrb[0].mxu0
    %1723 = vdwg.mxu0
    %v1724 = vpack.c.bf16 %v1601, %v1598
    %v1725 = vpack.c.bf16 %v1609, %v1606
    %v1726 = vpack.c.bf16 %v1617, %v1614
    %v1727 = vpack.c.bf16 %v1625, %v1622
    %v1728 = vpack.c.bf16 %v1633, %v1630
    %v1729 = vpack.c.bf16 %v1641, %v1638
    %v1730 = vpack.c.bf16 %v1649, %v1646
    %v1731 = vpack.c.bf16 %v1657, %v1654
    %v1732 = vpack.c.bf16 %v1665, %v1662
    %v1733 = vpack.c.bf16 %v1673, %v1670
    %v1734 = vpack.c.bf16 %v1681, %v1678
    %v1735 = vpack.c.bf16 %v1689, %v1686
    %v1736 = vpack.c.bf16 %v1697, %v1694
    %v1737 = vpack.c.bf16 %v1705, %v1702
    %v1738 = vpack.c.bf16 %v1713, %v1710
    %v1739 = vpack.c.bf16 %v1721, %v1718
    %v1756 = vunpack.c.l.b16 %v1724
    %v1757 = vunpack.c.h.b16 %v1724
    %v1758 = vunpack.c.l.b16 %v1725
    %v1759 = vunpack.c.h.b16 %v1725
    %v1760 = vunpack.c.l.b16 %v1726
    %v1761 = vunpack.c.h.b16 %v1726
    %v1762 = vunpack.c.l.b16 %v1727
    %v1763 = vunpack.c.h.b16 %v1727
    %v1764 = vunpack.c.l.b16 %v1728
    %v1765 = vunpack.c.h.b16 %v1728
    %v1766 = vunpack.c.l.b16 %v1729
    %v1767 = vunpack.c.h.b16 %v1729
    %v1768 = vunpack.c.l.b16 %v1730
    %v1769 = vunpack.c.h.b16 %v1730
    %v1770 = vunpack.c.l.b16 %v1731
    %v1771 = vunpack.c.h.b16 %v1731
    %v1772 = vunpack.c.l.b16 %v1732
    %v1773 = vunpack.c.h.b16 %v1732
    %v1774 = vunpack.c.l.b16 %v1733
    %v1775 = vunpack.c.h.b16 %v1733
    %v1776 = vunpack.c.l.b16 %v1734
    %v1777 = vunpack.c.h.b16 %v1734
    %v1778 = vunpack.c.l.b16 %v1735
    %v1779 = vunpack.c.h.b16 %v1735
    %v1780 = vunpack.c.l.b16 %v1736
    %v1781 = vunpack.c.h.b16 %v1736
    %v1782 = vunpack.c.l.b16 %v1737
    %v1783 = vunpack.c.h.b16 %v1737
    %v1784 = vunpack.c.l.b16 %v1738
    %v1785 = vunpack.c.h.b16 %v1738
    %v1786 = vunpack.c.l.b16 %v1739
    %v1787 = vunpack.c.h.b16 %v1739
    %v1788 = vpack.c.b16 %v1756, %v1756
    %v1789 = vpack.c.b16 %v1757, %v1757
    %v1790 = vpack.c.b16 %v1758, %v1758
    %v1791 = vpack.c.b16 %v1759, %v1759
    %v1792 = vpack.c.b16 %v1760, %v1760
    %v1793 = vpack.c.b16 %v1761, %v1761
    %v1794 = vpack.c.b16 %v1762, %v1762
    %v1795 = vpack.c.b16 %v1763, %v1763
    %v1796 = vpack.c.b16 %v1764, %v1764
    %v1797 = vpack.c.b16 %v1765, %v1765
    %v1798 = vpack.c.b16 %v1766, %v1766
    %v1799 = vpack.c.b16 %v1767, %v1767
    %v1800 = vpack.c.b16 %v1768, %v1768
    %v1801 = vpack.c.b16 %v1769, %v1769
    %v1802 = vpack.c.b16 %v1770, %v1770
    %v1803 = vpack.c.b16 %v1771, %v1771
    %v1804 = vpack.c.b16 %v1772, %v1772
    %v1805 = vpack.c.b16 %v1773, %v1773
    %v1806 = vpack.c.b16 %v1774, %v1774
    %v1807 = vpack.c.b16 %v1775, %v1775
    %v1808 = vpack.c.b16 %v1776, %v1776
    %v1809 = vpack.c.b16 %v1777, %v1777
    %v1810 = vpack.c.b16 %v1778, %v1778
    %v1811 = vpack.c.b16 %v1779, %v1779
    %v1812 = vpack.c.b16 %v1780, %v1780
    %v1813 = vpack.c.b16 %v1781, %v1781
    %v1814 = vpack.c.b16 %v1782, %v1782
    %v1815 = vpack.c.b16 %v1783, %v1783
    %v1816 = vpack.c.b16 %v1784, %v1784
    %v1817 = vpack.c.b16 %v1785, %v1785
    %v1818 = vpack.c.b16 %v1786, %v1786
    %v1819 = vpack.c.b16 %v1787, %v1787
    %1852 = vst [vmem:[#allocation2] sm:$0xf] %v1788
    %1853 = vst [vmem:[#allocation2 + $0x4] sm:$0xf] %v1789
    %1854 = vst [vmem:[#allocation2 + $0x8] sm:$0xf] %v1790
    %1855 = vst [vmem:[#allocation2 + $0xc] sm:$0xf] %v1791
    %1856 = vst [vmem:[#allocation2 + $0x10] sm:$0xf] %v1792
    %1857 = vst [vmem:[#allocation2 + $0x14] sm:$0xf] %v1793
    %1858 = vst [vmem:[#allocation2 + $0x18] sm:$0xf] %v1794
    %1859 = vst [vmem:[#allocation2 + $0x1c] sm:$0xf] %v1795
    %1860 = vst [vmem:[#allocation2 + $0x20] sm:$0xf] %v1796
    %1861 = vst [vmem:[#allocation2 + $0x24] sm:$0xf] %v1797
    %1862 = vst [vmem:[#allocation2 + $0x28] sm:$0xf] %v1798
    %1863 = vst [vmem:[#allocation2 + $0x2c] sm:$0xf] %v1799
    %1864 = vst [vmem:[#allocation2 + $0x30] sm:$0xf] %v1800
    %1865 = vst [vmem:[#allocation2 + $0x34] sm:$0xf] %v1801
    %1866 = vst [vmem:[#allocation2 + $0x38] sm:$0xf] %v1802
    %1867 = vst [vmem:[#allocation2 + $0x3c] sm:$0xf] %v1803
    %1868 = vst [vmem:[#allocation2 + $0x40] sm:$0xf] %v1804
    %1869 = vst [vmem:[#allocation2 + $0x44] sm:$0xf] %v1805
    %1870 = vst [vmem:[#allocation2 + $0x48] sm:$0xf] %v1806
    %1871 = vst [vmem:[#allocation2 + $0x4c] sm:$0xf] %v1807
    %1872 = vst [vmem:[#allocation2 + $0x50] sm:$0xf] %v1808
    %1873 = vst [vmem:[#allocation2 + $0x54] sm:$0xf] %v1809
    %1874 = vst [vmem:[#allocation2 + $0x58] sm:$0xf] %v1810
    %1875 = vst [vmem:[#allocation2 + $0x5c] sm:$0xf] %v1811
    %1876 = vst [vmem:[#allocation2 + $0x60] sm:$0xf] %v1812
    %1877 = vst [vmem:[#allocation2 + $0x64] sm:$0xf] %v1813
    %1878 = vst [vmem:[#allocation2 + $0x68] sm:$0xf] %v1814
    %1879 = vst [vmem:[#allocation2 + $0x6c] sm:$0xf] %v1815
    %1880 = vst [vmem:[#allocation2 + $0x70] sm:$0xf] %v1816
    %1881 = vst [vmem:[#allocation2 + $0x74] sm:$0xf] %v1817
    %1882 = vst [vmem:[#allocation2 + $0x78] sm:$0xf] %v1818
    %1883 = vst [vmem:[#allocation2 + $0x7c] sm:$0xf] %v1819
    // Predicated region
    $region46: #{tpu_custom_call.1} parent=1 // pred_check
      _
    $region47: #{tpu_custom_call.1} parent=1 // pred_check_branch
      %1885 = sbr.rel (0) target = $region49
    $region48: #{tpu_custom_call.1} parent=1 // pred_region
      %s1887 = ssub.s32 2048, 2048
      %1888 = vsyncadd [#allocation3], %s1887
      %s1889 = sshll.u32 [#allocation2], 4
      %s1890 = int_to_ptr.vmem [resolvable:$true] %s1889
      %1895 = dma.vmem_to_hbm [thread:$0]  %s1890, 2048, %s11, [#allocation3], 64, 64, 4
    $region49: #{tpu_custom_call.1} parent=1 // pred_fallthru
      _
    // Predicated region
    $region50: #{tpu_custom_call.1} parent=1 // pred_check
      _
    $region51: #{tpu_custom_call.1} parent=1 // pred_check_branch
      %1897 = sbr.rel (0) target = $region53
    $region52: #{tpu_custom_call.1} parent=1 // pred_region
      %1898 = dma.done [#allocation3], 2048
    $region53: #{tpu_custom_call.1} parent=1 // pred_fallthru
      _
    %1899 = vsyncpa [#allocation3], 1

</llo_original>
